<compile_context>
chip_gen: v7x
topology: tpu7x:2x2x1
jax: 0.10.0
libtpu: 0.0.40
codegen_flags: <defaults>
</compile_context>

<pallas_src>
import functools
import math

import jax
import jax.numpy as jnp
from jax.experimental import pallas as pl
from jax.experimental.pallas import tpu as pltpu


# ----------------------------- helpers ---------------------------------------

_LANE = 128
_NT_DIMS = (((1,), (1,)), ((), ()))   # contract last dim of both operands: A @ B^T


def _round_up(x, m):
    return ((x + m - 1) // m) * m


def _pad2(a, rows, cols):
    return jnp.pad(a, ((0, rows - a.shape[0]), (0, cols - a.shape[1])))


def _pick_tm(npad):
    """Largest row tile (multiple of 128) keeping per-step VMEM modest."""
    for tm in (512, 256, 128):
        if npad % tm == 0 and 8 * tm * npad <= (24 << 20):
            return tm
    return 128


def _mk_params(sem, est_block_bytes):
    # 2x headroom for double-buffering; capped under v7x's 64 MiB physical VMEM.
    limit = int(min(max(2 * est_block_bytes, 16 << 20), 48 << 20))
    return pltpu.CompilerParams(dimension_semantics=sem, vmem_limit_bytes=limit)


# ----------------------------- Pallas kernels ---------------------------------

def _project_kernel(z_ref, w_ref, out_ref):
    # out_tile = z_tile @ w   (bf16 in, f32 accumulate, bf16 out for next stage)
    out_ref[...] = jnp.dot(z_ref[...], w_ref[...],
                           preferred_element_type=jnp.float32).astype(out_ref.dtype)


def _propagate_kernel(l_ref, zw_ref, out_ref, *, apply_relu):
    # out_tile = [relu](L_tile @ ZW); L_tile: (TM, Npad) bf16, ZW: (Npad, Dout) bf16
    acc = jnp.dot(l_ref[...], zw_ref[...], preferred_element_type=jnp.float32)
    if apply_relu:
        acc = jnp.maximum(acc, 0.0)
    out_ref[...] = acc.astype(out_ref.dtype)


def _dist_softmax_kernel(eq_ref, ek_ref, sqall_ref, rec_ref, *, n_valid):
    # recons_w row-tile = softmax(-relu(pairwise sq dist), dim=1) + 1e-10
    eq = eq_ref[...]                                               # (TM, D2p) f32
    sq_q = jnp.sum(eq * eq, axis=1, keepdims=True)                 # (TM, 1)  f32
    # cross = E_tile @ E^T on the MXU: bf16 inputs, f32 accumulation (NT dims,
    # so no transposed copy of E is materialized).
    cross = jax.lax.dot_general(eq.astype(ek_ref.dtype), ek_ref[...], _NT_DIMS,
                                preferred_element_type=jnp.float32)  # (TM, Npad)
    # -relu(sq_q + sq_k - 2*cross) == min(2*cross - sq_q - sq_k, 0); all <= 0
    # and the row max ~ 0 (diagonal), so the softmax shift pass is skipped.
    neg = jnp.minimum(2.0 * cross - sq_q - sqall_ref[...], 0.0)
    col = jax.lax.broadcasted_iota(jnp.int32, neg.shape, 1)
    ex = jnp.where(col < n_valid, jnp.exp(neg), 0.0)               # mask padded cols
    den = jnp.maximum(jnp.sum(ex, axis=1, keepdims=True), 1e-30)
    rec_ref[...] = ex * (1.0 / den) + 1e-10                        # exact divide


# ----------------------------- pallas_call builders ----------------------------

def _project(z_bf, w_bf, *, tm):
    v, npad, din = z_bf.shape
    dout = w_bf.shape[-1]
    nm = npad // tm
    est = 2 * (tm * din + din * dout + tm * dout)
    return pl.pallas_call(
        _project_kernel,
        out_shape=jax.ShapeDtypeStruct((v, npad, dout), jnp.bfloat16),
        grid_spec=pltpu.PrefetchScalarGridSpec(
            num_scalar_prefetch=0,
            grid=(v, nm),
            in_specs=[pl.BlockSpec((None, tm, din), lambda iv, i: (iv, i, 0)),
                      pl.BlockSpec((None, din, dout), lambda iv, i: (iv, 0, 0))],
            out_specs=pl.BlockSpec((None, tm, dout), lambda iv, i: (iv, i, 0)),
        ),
        compiler_params=_mk_params(("parallel", "parallel"), est),
    )(z_bf, w_bf)


def _propagate(laps_bf, zw_bf, *, apply_relu, tm, out_dtype):
    v, npad, _ = laps_bf.shape
    dout = zw_bf.shape[-1]
    nm = npad // tm
    est = 2 * tm * npad + 2 * npad * dout + 4 * tm * dout
    kernel = functools.partial(_propagate_kernel, apply_relu=apply_relu)
    return pl.pallas_call(
        kernel,
        out_shape=jax.ShapeDtypeStruct((v, npad, dout), out_dtype),
        grid_spec=pltpu.PrefetchScalarGridSpec(
            num_scalar_prefetch=0,
            grid=(v, nm),
            in_specs=[pl.BlockSpec((None, tm, npad), lambda iv, i: (iv, i, 0)),
                      pl.BlockSpec((None, npad, dout), lambda iv, i: (iv, 0, 0))],
            out_specs=pl.BlockSpec((None, tm, dout), lambda iv, i: (iv, i, 0)),
        ),
        compiler_params=_mk_params(("parallel", "parallel"), est),
    )(laps_bf, zw_bf)


def _dist_softmax(e_f32, e_bf, sq_rows, *, n_valid, tm):
    v, npad, d2p = e_f32.shape
    nm = npad // tm
    est = 4 * tm * d2p + 2 * npad * d2p + 4 * npad + 4 * tm * npad
    kernel = functools.partial(_dist_softmax_kernel, n_valid=n_valid)
    return pl.pallas_call(
        kernel,
        out_shape=jax.ShapeDtypeStruct((v, npad, npad), jnp.float32),
        grid_spec=pltpu.PrefetchScalarGridSpec(
            num_scalar_prefetch=0,
            grid=(v, nm),
            in_specs=[pl.BlockSpec((None, tm, d2p), lambda iv, i: (iv, i, 0)),
                      pl.BlockSpec((None, npad, d2p), lambda iv, i: (iv, 0, 0)),
                      pl.BlockSpec((None, 1, npad), lambda iv, i: (iv, 0, 0))],
            out_specs=pl.BlockSpec((None, tm, npad), lambda iv, i: (iv, i, 0)),
        ),
        compiler_params=_mk_params(("parallel", "parallel"), est),
    )(e_f32, e_bf, sq_rows)


# ----------------------------- stacked forward ---------------------------------

@functools.partial(jax.jit, static_argnames=("n_valid", "tm"))
def _adagae_forward_stacked(xs, laps, w1s, w2s, *, n_valid, tm):
    """xs: [V,Npad,Dinp] f32, laps: [V,Npad,Npad] f32, w1s/w2s zero-padded & stacked."""
    bf = jnp.bfloat16
    laps_bf = laps.astype(bf)                                              # cast once
    zw1 = _project(xs.astype(bf), w1s.astype(bf), tm=tm)                   # [V,Npad,D1p]
    h = _propagate(laps_bf, zw1, apply_relu=True, tm=tm, out_dtype=bf)     # relu(L @ XW1)
    zw2 = _project(h, w2s.astype(bf), tm=tm)                               # [V,Npad,D2p]
    e = _propagate(laps_bf, zw2, apply_relu=False, tm=tm,
                   out_dtype=jnp.float32)                                  # L @ HW2 (f32)
    e_bf = e.astype(bf)                                                    # MXU-side RHS
    # lane-oriented per-column squared norms [V,1,Npad] (tiny XLA glue op)
    sq_rows = jnp.sum(e * e, axis=2)[:, None, :]
    rec = _dist_softmax(e, e_bf, sq_rows, n_valid=n_valid, tm=tm)
    return e, rec


# ----------------------------- module wrapper ----------------------------------

def get_weight_initial(key, shape):
    """Matches AdaGAE.get_weight_initial: U(-b, b), b = sqrt(6/(fan_in+fan_out))."""
    bound = math.sqrt(6.0 / (shape[0] + shape[1]))
    return jax.random.uniform(key, shape, jnp.float32, -bound, bound)


class AdaGAEMV:
    """Multi-view AdaGAE (z_pass_linear=False path of the torch module)."""

    def __init__(self, X, layers, key):
        self.layers = list(layers)
        self.params = []
        for x in X:
            k1, k2, key = jax.random.split(key, 3)
            w1 = get_weight_initial(k1, (x.shape[1], layers[0]))
            w2 = get_weight_initial(k2, (layers[0], layers[1]))
            self.params.append((w1, w2))

    def forward(self, X, laplacian_mv):
        n = X[0].shape[0]
        d1, d2 = self.layers
        npad = _round_up(max(n, 8), _LANE)
        dinp = _round_up(max(x.shape[1] for x in X), _LANE)
        d1p = _round_up(d1, _LANE)
        d2p = _round_up(d2, _LANE)
        # Zero-pad all views to common lane-aligned dims and stack (exact: zero
        # rows/cols contribute exact zeros to every matmul).
        xs = jnp.stack([_pad2(x, npad, dinp) for x in X])
        laps = jnp.stack([_pad2(l, npad, npad) for l in laplacian_mv])
        w1s = jnp.stack([_pad2(w1, dinp, d1p) for (w1, _) in self.params])
        w2s = jnp.stack([_pad2(w2, d1p, d2p) for (_, w2) in self.params])
        emb_p, rec_p = _adagae_forward_stacked(xs, laps, w1s, w2s,
                                               n_valid=n, tm=_pick_tm(npad))
        embedding_list = [emb_p[i, :n, :d2] for i in range(len(X))]
        recons_w_list = [rec_p[i, :n, :n] for i in range(len(X))]
        return embedding_list, recons_w_list


# ----------------------------- reference (plain JAX) ---------------------------

def _adagae_fwd_ref(x, lap, w1, w2):
    """Plain-JAX reference mirroring the kernel's mixed precision (bf16 MXU
    inputs / f32 accumulation) so the comparison is meaningful."""
    bf, f32 = jnp.bfloat16, jnp.float32
    lap_bf = lap.astype(bf)
    zw1 = jnp.dot(x.astype(bf), w1.astype(bf), preferred_element_type=f32).astype(bf)
    h = jax.nn.relu(jnp.dot(lap_bf, zw1, preferred_element_type=f32)).astype(bf)
    zw2 = jnp.dot(h, w2.astype(bf), preferred_element_type=f32).astype(bf)
    e = jnp.dot(lap_bf, zw2, preferred_element_type=f32)
    e_bf = e.astype(bf)
    sq = jnp.sum(e * e, axis=1, keepdims=True)
    cross = jnp.dot(e_bf, e_bf.T, preferred_element_type=f32)
    dist = jnp.maximum(sq + sq.T - 2.0 * cross, 0.0)
    rec = jax.nn.softmax(-dist, axis=1) + 1e-10
    return e, rec


# ----------------------------- main --------------------------------------------

def _make_laplacian(key, n):
    """Deterministic symmetric normalized adjacency D^-1/2 (A + I) D^-1/2."""
    a = jax.random.uniform(key, (n, n), jnp.float32)
    a = 0.5 * (a + a.T) + jnp.eye(n, dtype=jnp.float32)
    d = jnp.sum(a, axis=1)
    dinv = 1.0 / jnp.sqrt(d)
    return a * dinv[:, None] * dinv[None, :]


if __name__ == "__main__":
    key = jax.random.PRNGKey(0)
    k_x0, k_x1, k_l0, k_l1, k_model = jax.random.split(key, 5)

    N = 16                 # number of nodes / samples (shared across views)
    view_dims = [8, 12]    # per-view feature dims
    layers = [32, 16]      # hidden dims [d1, d2]

    X = [
        jax.random.normal(k_x0, (N, view_dims[0]), jnp.float32),
        jax.random.normal(k_x1, (N, view_dims[1]), jnp.float32),
    ]
    laplacian_mv = [_make_laplacian(k_l0, N), _make_laplacian(k_l1, N)]

    model = AdaGAEMV(X, layers, k_model)
    embedding_list, recons_w_list = model.forward(X, laplacian_mv)
    jax.block_until_ready(embedding_list)
    jax.block_until_ready(recons_w_list)

    ok = True
    for i in range(len(X)):
        w1, w2 = model.params[i]
        e_ref, r_ref = _adagae_fwd_ref(X[i], laplacian_mv[i], w1, w2)
        ok &= bool(jnp.allclose(embedding_list[i], e_ref, atol=1e-4, rtol=1e-3))
        ok &= bool(jnp.allclose(recons_w_list[i], r_ref, atol=1e-4, rtol=1e-3))

    print("KERNEL_OK" if ok else "MISMATCH")
</pallas_src>

<mosaic_0001>
module attributes {stable_mosaic.version = 11 : i64} {
  func.func @_project_kernel(%arg0: i32, %arg1: i32, %arg2: memref<1x128x128xbf16, #tpu.memory_space<vmem>>, %arg3: memref<1x128x128xbf16, #tpu.memory_space<vmem>>, %arg4: memref<1x128x128xbf16, #tpu.memory_space<vmem>>) attributes {dimension_semantics = [#tpu.dimension_semantics<parallel>, #tpu.dimension_semantics<parallel>], iteration_bounds = array<i64: 2, 1>, scalar_prefetch = 0 : i64, scratch_operands = 0 : i64, tpu.core_type = #tpu.core_type<tc>, window_params = [{transform_indices = @transform_0, window_bounds = array<i64: 1, 128, 128>}, {transform_indices = @transform_1, window_bounds = array<i64: 1, 128, 128>}, {transform_indices = @transform_2, window_bounds = array<i64: 1, 128, 128>}]} {
    %c0 = arith.constant 0 : index
    %c0_0 = arith.constant 0 : index
    %c0_1 = arith.constant 0 : index
    %0 = vector.load %arg2[%c0, %c0_0, %c0_1] : memref<1x128x128xbf16, #tpu.memory_space<vmem>>, vector<1x128x128xbf16>
    %1 = vector.shape_cast %0 : vector<1x128x128xbf16> to vector<128x128xbf16>
    %c0_2 = arith.constant 0 : index
    %c0_3 = arith.constant 0 : index
    %c0_4 = arith.constant 0 : index
    %2 = vector.load %arg3[%c0_2, %c0_3, %c0_4] : memref<1x128x128xbf16, #tpu.memory_space<vmem>>, vector<1x128x128xbf16>
    %3 = vector.shape_cast %2 : vector<1x128x128xbf16> to vector<128x128xbf16>
    %cst = arith.constant dense<0.000000e+00> : vector<128x128xf32>
    %4 = tpu.matmul %1, %3, %cst {dimension_numbers = #tpu.dot_dimension_numbers<[1], [0], [0], [1], [0, 0, 1, 1], [], []>} : vector<128x128xbf16>, vector<128x128xbf16>, vector<128x128xf32> -> vector<128x128xf32>
    %5 = arith.truncf %4 : vector<128x128xf32> to vector<128x128xbf16>
    %c0_5 = arith.constant 0 : index
    %c0_6 = arith.constant 0 : index
    %c0_7 = arith.constant 0 : index
    %6 = vector.load %arg4[%c0_5, %c0_6, %c0_7] : memref<1x128x128xbf16, #tpu.memory_space<vmem>>, vector<1x128x128xbf16>
    %7 = vector.shape_cast %6 : vector<1x128x128xbf16> to vector<128x128xbf16>
    %8 = vector.shape_cast %5 : vector<128x128xbf16> to vector<1x128x128xbf16>
    tpu.vector_store %arg4[%c0_5, %c0_6, %c0_7], %8 {strides = array<i32>} : memref<1x128x128xbf16, #tpu.memory_space<vmem>>, vector<1x128x128xbf16>,
    return
  }
  func.func @transform_0(%arg0: i32, %arg1: i32) -> (i32, i32, i32) {
    %c0_i32 = arith.constant 0 : i32
    %c0_i32_0 = arith.constant 0 : i32
    return %arg0, %arg1, %c0_i32 : i32, i32, i32
  }
  func.func @transform_1(%arg0: i32, %arg1: i32) -> (i32, i32, i32) {
    %c0_i32 = arith.constant 0 : i32
    %c0_i32_0 = arith.constant 0 : i32
    %c0_i32_1 = arith.constant 0 : i32
    return %arg0, %c0_i32, %c0_i32_0 : i32, i32, i32
  }
  func.func @transform_2(%arg0: i32, %arg1: i32) -> (i32, i32, i32) {
    %c0_i32 = arith.constant 0 : i32
    %c0_i32_0 = arith.constant 0 : i32
    return %arg0, %arg1, %c0_i32 : i32, i32, i32
  }
}

module attributes {stable_mosaic.version = 11 : i64} {
  func.func @_propagate_kernel(%arg0: i32, %arg1: i32, %arg2: memref<1x128x128xbf16, #tpu.memory_space<vmem>>, %arg3: memref<1x128x128xbf16, #tpu.memory_space<vmem>>, %arg4: memref<1x128x128xbf16, #tpu.memory_space<vmem>>) attributes {dimension_semantics = [#tpu.dimension_semantics<parallel>, #tpu.dimension_semantics<parallel>], iteration_bounds = array<i64: 2, 1>, scalar_prefetch = 0 : i64, scratch_operands = 0 : i64, tpu.core_type = #tpu.core_type<tc>, window_params = [{transform_indices = @transform_0, window_bounds = array<i64: 1, 128, 128>}, {transform_indices = @transform_1, window_bounds = array<i64: 1, 128, 128>}, {transform_indices = @transform_2, window_bounds = array<i64: 1, 128, 128>}]} {
    %c0 = arith.constant 0 : index
    %c0_0 = arith.constant 0 : index
    %c0_1 = arith.constant 0 : index
    %0 = vector.load %arg2[%c0, %c0_0, %c0_1] : memref<1x128x128xbf16, #tpu.memory_space<vmem>>, vector<1x128x128xbf16>
    %1 = vector.shape_cast %0 : vector<1x128x128xbf16> to vector<128x128xbf16>
    %c0_2 = arith.constant 0 : index
    %c0_3 = arith.constant 0 : index
    %c0_4 = arith.constant 0 : index
    %2 = vector.load %arg3[%c0_2, %c0_3, %c0_4] : memref<1x128x128xbf16, #tpu.memory_space<vmem>>, vector<1x128x128xbf16>
    %3 = vector.shape_cast %2 : vector<1x128x128xbf16> to vector<128x128xbf16>
    %cst = arith.constant dense<0.000000e+00> : vector<128x128xf32>
    %4 = tpu.matmul %1, %3, %cst {dimension_numbers = #tpu.dot_dimension_numbers<[1], [0], [0], [1], [0, 0, 1, 1], [], []>} : vector<128x128xbf16>, vector<128x128xbf16>, vector<128x128xf32> -> vector<128x128xf32>
    %cst_5 = arith.constant 0.000000e+00 : f32
    %5 = vector.broadcast %cst_5 : f32 to vector<128x128xf32>
    %6 = arith.maximumf %4, %5 : vector<128x128xf32>
    %7 = arith.truncf %6 : vector<128x128xf32> to vector<128x128xbf16>
    %c0_6 = arith.constant 0 : index
    %c0_7 = arith.constant 0 : index
    %c0_8 = arith.constant 0 : index
    %8 = vector.load %arg4[%c0_6, %c0_7, %c0_8] : memref<1x128x128xbf16, #tpu.memory_space<vmem>>, vector<1x128x128xbf16>
    %9 = vector.shape_cast %8 : vector<1x128x128xbf16> to vector<128x128xbf16>
    %10 = vector.shape_cast %7 : vector<128x128xbf16> to vector<1x128x128xbf16>
    tpu.vector_store %arg4[%c0_6, %c0_7, %c0_8], %10 {strides = array<i32>} : memref<1x128x128xbf16, #tpu.memory_space<vmem>>, vector<1x128x128xbf16>,
    return
  }
  func.func @transform_0(%arg0: i32, %arg1: i32) -> (i32, i32, i32) {
    %c0_i32 = arith.constant 0 : i32
    %c0_i32_0 = arith.constant 0 : i32
    return %arg0, %arg1, %c0_i32 : i32, i32, i32
  }
  func.func @transform_1(%arg0: i32, %arg1: i32) -> (i32, i32, i32) {
    %c0_i32 = arith.constant 0 : i32
    %c0_i32_0 = arith.constant 0 : i32
    %c0_i32_1 = arith.constant 0 : i32
    return %arg0, %c0_i32, %c0_i32_0 : i32, i32, i32
  }
  func.func @transform_2(%arg0: i32, %arg1: i32) -> (i32, i32, i32) {
    %c0_i32 = arith.constant 0 : i32
    %c0_i32_0 = arith.constant 0 : i32
    return %arg0, %arg1, %c0_i32 : i32, i32, i32
  }
}

module attributes {stable_mosaic.version = 11 : i64} {
  func.func @_propagate_kernel(%arg0: i32, %arg1: i32, %arg2: memref<1x128x128xbf16, #tpu.memory_space<vmem>>, %arg3: memref<1x128x128xbf16, #tpu.memory_space<vmem>>, %arg4: memref<1x128x128xf32, #tpu.memory_space<vmem>>) attributes {dimension_semantics = [#tpu.dimension_semantics<parallel>, #tpu.dimension_semantics<parallel>], iteration_bounds = array<i64: 2, 1>, scalar_prefetch = 0 : i64, scratch_operands = 0 : i64, tpu.core_type = #tpu.core_type<tc>, window_params = [{transform_indices = @transform_0, window_bounds = array<i64: 1, 128, 128>}, {transform_indices = @transform_1, window_bounds = array<i64: 1, 128, 128>}, {transform_indices = @transform_2, window_bounds = array<i64: 1, 128, 128>}]} {
    %c0 = arith.constant 0 : index
    %c0_0 = arith.constant 0 : index
    %c0_1 = arith.constant 0 : index
    %0 = vector.load %arg2[%c0, %c0_0, %c0_1] : memref<1x128x128xbf16, #tpu.memory_space<vmem>>, vector<1x128x128xbf16>
    %1 = vector.shape_cast %0 : vector<1x128x128xbf16> to vector<128x128xbf16>
    %c0_2 = arith.constant 0 : index
    %c0_3 = arith.constant 0 : index
    %c0_4 = arith.constant 0 : index
    %2 = vector.load %arg3[%c0_2, %c0_3, %c0_4] : memref<1x128x128xbf16, #tpu.memory_space<vmem>>, vector<1x128x128xbf16>
    %3 = vector.shape_cast %2 : vector<1x128x128xbf16> to vector<128x128xbf16>
    %cst = arith.constant dense<0.000000e+00> : vector<128x128xf32>
    %4 = tpu.matmul %1, %3, %cst {dimension_numbers = #tpu.dot_dimension_numbers<[1], [0], [0], [1], [0, 0, 1, 1], [], []>} : vector<128x128xbf16>, vector<128x128xbf16>, vector<128x128xf32> -> vector<128x128xf32>
    %c0_5 = arith.constant 0 : index
    %c0_6 = arith.constant 0 : index
    %c0_7 = arith.constant 0 : index
    %5 = vector.load %arg4[%c0_5, %c0_6, %c0_7] : memref<1x128x128xf32, #tpu.memory_space<vmem>>, vector<1x128x128xf32>
    %6 = vector.shape_cast %5 : vector<1x128x128xf32> to vector<128x128xf32>
    %7 = vector.shape_cast %4 : vector<128x128xf32> to vector<1x128x128xf32>
    tpu.vector_store %arg4[%c0_5, %c0_6, %c0_7], %7 {strides = array<i32>} : memref<1x128x128xf32, #tpu.memory_space<vmem>>, vector<1x128x128xf32>,
    return
  }
  func.func @transform_0(%arg0: i32, %arg1: i32) -> (i32, i32, i32) {
    %c0_i32 = arith.constant 0 : i32
    %c0_i32_0 = arith.constant 0 : i32
    return %arg0, %arg1, %c0_i32 : i32, i32, i32
  }
  func.func @transform_1(%arg0: i32, %arg1: i32) -> (i32, i32, i32) {
    %c0_i32 = arith.constant 0 : i32
    %c0_i32_0 = arith.constant 0 : i32
    %c0_i32_1 = arith.constant 0 : i32
    return %arg0, %c0_i32, %c0_i32_0 : i32, i32, i32
  }
  func.func @transform_2(%arg0: i32, %arg1: i32) -> (i32, i32, i32) {
    %c0_i32 = arith.constant 0 : i32
    %c0_i32_0 = arith.constant 0 : i32
    return %arg0, %arg1, %c0_i32 : i32, i32, i32
  }
}

module attributes {stable_mosaic.version = 11 : i64} {
  func.func @_dist_softmax_kernel(%arg0: i32, %arg1: i32, %arg2: memref<1x128x128xf32, #tpu.memory_space<vmem>>, %arg3: memref<1x128x128xbf16, #tpu.memory_space<vmem>>, %arg4: memref<1x1x128xf32, #tpu.memory_space<vmem>>, %arg5: memref<1x128x128xf32, #tpu.memory_space<vmem>>) attributes {dimension_semantics = [#tpu.dimension_semantics<parallel>, #tpu.dimension_semantics<parallel>], iteration_bounds = array<i64: 2, 1>, scalar_prefetch = 0 : i64, scratch_operands = 0 : i64, tpu.core_type = #tpu.core_type<tc>, window_params = [{transform_indices = @transform_0, window_bounds = array<i64: 1, 128, 128>}, {transform_indices = @transform_1, window_bounds = array<i64: 1, 128, 128>}, {transform_indices = @transform_2, window_bounds = array<i64: 1, 1, 128>}, {transform_indices = @transform_3, window_bounds = array<i64: 1, 128, 128>}]} {
    %c0 = arith.constant 0 : index
    %c0_0 = arith.constant 0 : index
    %c0_1 = arith.constant 0 : index
    %0 = vector.load %arg2[%c0, %c0_0, %c0_1] : memref<1x128x128xf32, #tpu.memory_space<vmem>>, vector<1x128x128xf32>
    %1 = vector.shape_cast %0 : vector<1x128x128xf32> to vector<128x128xf32>
    %2 = arith.mulf %1, %1 : vector<128x128xf32>
    %cst = arith.constant dense<0.000000e+00> : vector<128xf32>
    %3 = vector.multi_reduction <add>, %2, %cst [1] : vector<128x128xf32> to vector<128xf32>
    %4 = vector.shape_cast %3 : vector<128xf32> to vector<128x1xf32>
    %5 = arith.truncf %1 : vector<128x128xf32> to vector<128x128xbf16>
    %c0_2 = arith.constant 0 : index
    %c0_3 = arith.constant 0 : index
    %c0_4 = arith.constant 0 : index
    %6 = vector.load %arg3[%c0_2, %c0_3, %c0_4] : memref<1x128x128xbf16, #tpu.memory_space<vmem>>, vector<1x128x128xbf16>
    %7 = vector.shape_cast %6 : vector<1x128x128xbf16> to vector<128x128xbf16>
    %cst_5 = arith.constant dense<0.000000e+00> : vector<128x128xf32>
    %8 = tpu.matmul %5, %7, %cst_5 {dimension_numbers = #tpu.dot_dimension_numbers<[1], [1], [0], [0], [0, 0, 1, 0], [], []>} : vector<128x128xbf16>, vector<128x128xbf16>, vector<128x128xf32> -> vector<128x128xf32>
    %cst_6 = arith.constant 2.000000e+00 : f32
    %9 = vector.broadcast %cst_6 : f32 to vector<128x128xf32>
    %10 = arith.mulf %9, %8 : vector<128x128xf32>
    %11 = vector.broadcast %4 : vector<128x1xf32> to vector<128x128xf32>
    %12 = arith.subf %10, %11 : vector<128x128xf32>
    %c0_7 = arith.constant 0 : index
    %c0_8 = arith.constant 0 : index
    %c0_9 = arith.constant 0 : index
    %13 = vector.load %arg4[%c0_7, %c0_8, %c0_9] : memref<1x1x128xf32, #tpu.memory_space<vmem>>, vector<1x1x128xf32>
    %14 = vector.shape_cast %13 : vector<1x1x128xf32> to vector<1x128xf32>
    %15 = vector.broadcast %14 : vector<1x128xf32> to vector<128x128xf32>
    %16 = arith.subf %12, %15 : vector<128x128xf32>
    %cst_10 = arith.constant 0.000000e+00 : f32
    %17 = vector.broadcast %cst_10 : f32 to vector<128x128xf32>
    %18 = arith.minimumf %16, %17 : vector<128x128xf32>
    %19 = tpu.iota {dimensions = array<i32: 1>} : vector<128x128xi32>
    %c16_i32 = arith.constant 16 : i32
    %20 = vector.broadcast %c16_i32 : i32 to vector<128x128xi32>
    %21 = arith.cmpi slt, %19, %20 : vector<128x128xi32>
    %22 = math.exp %18 : vector<128x128xf32>
    %cst_11 = arith.constant 0.000000e+00 : f32
    %23 = vector.broadcast %cst_11 : f32 to vector<128x128xf32>
    %24 = arith.select %21, %22, %23 : vector<128x128xi1>, vector<128x128xf32>
    %cst_12 = arith.constant dense<0.000000e+00> : vector<128xf32>
    %25 = vector.multi_reduction <add>, %24, %cst_12 [1] : vector<128x128xf32> to vector<128xf32>
    %26 = vector.shape_cast %25 : vector<128xf32> to vector<128x1xf32>
    %cst_13 = arith.constant 1.000000e-30 : f32
    %27 = vector.broadcast %cst_13 : f32 to vector<128x1xf32>
    %28 = arith.maximumf %26, %27 : vector<128x1xf32>
    %cst_14 = arith.constant 1.000000e+00 : f32
    %29 = vector.broadcast %cst_14 : f32 to vector<128x1xf32>
    %30 = arith.divf %29, %28 : vector<128x1xf32>
    %31 = vector.broadcast %30 : vector<128x1xf32> to vector<128x128xf32>
    %32 = arith.mulf %24, %31 : vector<128x128xf32>
    %cst_15 = arith.constant 1.000000e-10 : f32
    %33 = vector.broadcast %cst_15 : f32 to vector<128x128xf32>
    %34 = arith.addf %32, %33 : vector<128x128xf32>
    %c0_16 = arith.constant 0 : index
    %c0_17 = arith.constant 0 : index
    %c0_18 = arith.constant 0 : index
    %35 = vector.load %arg5[%c0_16, %c0_17, %c0_18] : memref<1x128x128xf32, #tpu.memory_space<vmem>>, vector<1x128x128xf32>
    %36 = vector.shape_cast %35 : vector<1x128x128xf32> to vector<128x128xf32>
    %37 = vector.shape_cast %34 : vector<128x128xf32> to vector<1x128x128xf32>
    tpu.vector_store %arg5[%c0_16, %c0_17, %c0_18], %37 {strides = array<i32>} : memref<1x128x128xf32, #tpu.memory_space<vmem>>, vector<1x128x128xf32>,
    return
  }
  func.func @transform_0(%arg0: i32, %arg1: i32) -> (i32, i32, i32) {
    %c0_i32 = arith.constant 0 : i32
    %c0_i32_0 = arith.constant 0 : i32
    return %arg0, %arg1, %c0_i32 : i32, i32, i32
  }
  func.func @transform_1(%arg0: i32, %arg1: i32) -> (i32, i32, i32) {
    %c0_i32 = arith.constant 0 : i32
    %c0_i32_0 = arith.constant 0 : i32
    %c0_i32_1 = arith.constant 0 : i32
    return %arg0, %c0_i32, %c0_i32_0 : i32, i32, i32
  }
  func.func @transform_2(%arg0: i32, %arg1: i32) -> (i32, i32, i32) {
    %c0_i32 = arith.constant 0 : i32
    %c0_i32_0 = arith.constant 0 : i32
    %c0_i32_1 = arith.constant 0 : i32
    return %arg0, %c0_i32, %c0_i32_0 : i32, i32, i32
  }
  func.func @transform_3(%arg0: i32, %arg1: i32) -> (i32, i32, i32) {
    %c0_i32 = arith.constant 0 : i32
    %c0_i32_0 = arith.constant 0 : i32
    return %arg0, %arg1, %c0_i32 : i32, i32, i32
  }
}

</mosaic_0001>

<llo_original>
// kernel: _adagae_forward_stacked.6
$region0: #{_adagae_forward_stacked.6}
  #allocation0 [shape = 'u32[]', space=smem, size = 0x4, offset = 0x4, fixed_abs, tag = 'smem constant byte address 0x4 - core index']
  #allocation1 [shape = 'u32[144,128]{1,0:T(1,128)}', space=vmem, size = 0x12000, scoped, tag = 'internal scratch']
  %s0 = inlined_call_operand.vmem [shape: bf16[2,128,128], index: 0, kind: input, shape index: {}]
  %s1 = inlined_call_operand.vmem [shape: bf16[2,128,128], index: 1, kind: input, shape index: {}]
  %s2 = inlined_call_operand.vmem [shape: bf16[2,128,128], index: 2, kind: output, shape index: {}]
  %s3 = sld [smem:[#allocation0]]
  $region41: #{_adagae_forward_stacked.6} parent=0
    _
  %s5 = ssub.s32 1, %s3
  %s6 = scalar_select 0, %s5, %s3
  loop: start=0, step=1, limit=4
  $region2: #{_adagae_forward_stacked.6} parent=0 // loop_pre_header
    _
  $region3: #{_adagae_forward_stacked.6} parent=0 // loop_header
    %s8 = sphi 0, %s12
    %p9 = scmp.ge.s32.totalorder %s8, 4
    %s15 = sphi 0, %s27
    %s16 = sphi 0, %s23
    %s17 = sphi 0, %s15
    %s18 = sphi 0, %s16
    %s19 = sphi 0, %s17
    %s20 = sphi 0, %s18
    %s32 = sphi 0, %s34
    %s35 = sphi 0, %s32
    %s36 = sphi 0, %s35
    %s52 = sphi 0, %s36
    %s58 = sphi 0, %s60
    %s61 = sphi 0, %s58
    %s62 = sphi 0, %s61
    %s78 = sphi 0, %s62
    %s86 = sphi 0, %s88
    %s89 = sphi 0, %s86
    %s90 = sphi 0, %s89
    %s106 = sphi 0, %s90
  $region4: #{_adagae_forward_stacked.6} parent=0 // loop_header_branch
    %11 = sbr.rel (%p9) target = $region8
  $region5: #{_adagae_forward_stacked.6} parent=0 // loop_body
    %s13 = ssub.s32 %s8, 1
    %s14 = ssub.s32 %s8, 2
    %s21 = sadd.s32 1, %s16
    %p22 = scmp.ge.s32.totalorder %s21, 1
    %s23 = scalar_select %p22, 0, %s21
    %s24 = sadd.s32 1, %s15
    %s25 = scalar_select %p22, %s24, %s15
    %p26 = scmp.ge.s32.totalorder %s25, 2
    %s27 = scalar_select %p26, 0, %s25
    %s28 = ssub.s32 %s15, %s27
    %s29 = ssub.s32 %s16, %s23
    %s30 = sor.u32 %s28, %s29
    %p31 = scmp.eq.s32.totalorder %s30, 0
    %s33 = sadd.s32 %s32, 1
    %s34 = scalar_select %p31, %s32, %s33
    %p37 = pneg %p31
    %p38 = scmp.eq.s32.totalorder %s8, 1
    %p39 = por %p37, %p38
    %p40 = scmp.ne.s32.totalorder %s32, %s35
    %p41 = scmp.eq.s32.totalorder %s8, 0
    %p42 = por %p40, %p41
    %p43 = scmp.ne.s32.totalorder %s32, %s35
    %p44 = scmp.eq.s32.totalorder %s13, 1
    %p45 = por %p43, %p44
    %p46 = scmp.ne.s32.totalorder %s35, %s36
    %p47 = scmp.eq.s32.totalorder %s13, 0
    %p48 = por %p46, %p47
    %p49 = scmp.ne.s32.totalorder %s35, %s36
    %p50 = scmp.eq.s32.totalorder %s14, 1
    %p51 = por %p49, %p50
    %p53 = scmp.ne.s32.totalorder %s36, %s52
    %p54 = scmp.eq.s32.totalorder %s14, 0
    %p55 = por %p53, %p54
    %s56 = ssub.s32 %s15, %s27
    %p57 = scmp.eq.s32.totalorder %s56, 0
    %s59 = sadd.s32 %s58, 1
    %s60 = scalar_select %p57, %s58, %s59
    %p63 = pneg %p57
    %p64 = scmp.eq.s32.totalorder %s8, 1
    %p65 = por %p63, %p64
    %p66 = scmp.ne.s32.totalorder %s58, %s61
    %p67 = scmp.eq.s32.totalorder %s8, 0
    %p68 = por %p66, %p67
    %p69 = scmp.ne.s32.totalorder %s58, %s61
    %p70 = scmp.eq.s32.totalorder %s13, 1
    %p71 = por %p69, %p70
    %p72 = scmp.ne.s32.totalorder %s61, %s62
    %p73 = scmp.eq.s32.totalorder %s13, 0
    %p74 = por %p72, %p73
    %p75 = scmp.ne.s32.totalorder %s61, %s62
    %p76 = scmp.eq.s32.totalorder %s14, 1
    %p77 = por %p75, %p76
    %p79 = scmp.ne.s32.totalorder %s62, %s78
    %p80 = scmp.eq.s32.totalorder %s14, 0
    %p81 = por %p79, %p80
    %s82 = ssub.s32 %s15, %s27
    %s83 = ssub.s32 %s16, %s23
    %s84 = sor.u32 %s82, %s83
    %p85 = scmp.eq.s32.totalorder %s84, 0
    %s87 = sadd.s32 %s86, 1
    %s88 = scalar_select %p85, %s86, %s87
    %p91 = pneg %p85
    %p92 = scmp.eq.s32.totalorder %s8, 1
    %p93 = por %p91, %p92
    %p94 = scmp.ne.s32.totalorder %s86, %s89
    %p95 = scmp.eq.s32.totalorder %s8, 0
    %p96 = por %p94, %p95
    %p97 = scmp.ne.s32.totalorder %s86, %s89
    %p98 = scmp.eq.s32.totalorder %s13, 1
    %p99 = por %p97, %p98
    %p100 = scmp.ne.s32.totalorder %s89, %s90
    %p101 = scmp.eq.s32.totalorder %s13, 0
    %p102 = por %p100, %p101
    %p103 = scmp.ne.s32.totalorder %s89, %s90
    %p104 = scmp.eq.s32.totalorder %s14, 1
    %p105 = por %p103, %p104
    %p107 = scmp.ne.s32.totalorder %s90, %s106
    %p108 = scmp.eq.s32.totalorder %s14, 0
    %p109 = por %p107, %p108
    %p110 = scmp.le.s32.totalorder 1, %s8
    %p111 = scmp.lt.s32.totalorder %s8, 3
    %p112 = pnand %p110, %p111
    %p113 = pneg %p112
    // Predicated region
    $region9: #{_adagae_forward_stacked.6} parent=5 // pred_check
      _
    $region10: #{_adagae_forward_stacked.6} parent=5 // pred_check_branch
      %115 = sbr.rel (%p112) target = $region12
    $region11: #{_adagae_forward_stacked.6} parent=5 // pred_region
      %s116 = ssub.s32 %s8, 1
    $region12: #{_adagae_forward_stacked.6} parent=5 // pred_fallthru
      _
    %p117 = scmp.lt.s32.totalorder %s8, 2
    // Predicated region
    $region13: #{_adagae_forward_stacked.6} parent=5 // pred_check
      %p118 = pneg %p117
    $region14: #{_adagae_forward_stacked.6} parent=5 // pred_check_branch
      %120 = sbr.rel (%p118) target = $region16
    $region15: #{_adagae_forward_stacked.6} parent=5 // pred_region
      // Predicated region
      $region17: #{_adagae_forward_stacked.6} parent=15 // pred_check
        %p121 = pneg %p42
      $region18: #{_adagae_forward_stacked.6} parent=15 // pred_check_branch
        %123 = sbr.rel (%p121) target = $region20
      $region19: #{_adagae_forward_stacked.6} parent=15 // pred_region
        %s124 = smul.u32 16, %s16
        %p125 = scmp.lt.s32.totalorder %s15, 1
        %s126 = scalar_select %p125, %s15, 1
        %p127 = scmp.lt.s32.totalorder %s124, 15
        %s128 = scalar_select %p127, %s124, 15
        %s129 = smul.addr %s126, 16
        %s130 = sadd.s32 %s128, %s129
        %s131 = smul.addr %s130, 4
        %s132 = scalar_lea.vmem %s0, %s131
        %s133 = smul.u32 16, %s16
      $region20: #{_adagae_forward_stacked.6} parent=15 // pred_fallthru
        _
      // Predicated region
      $region21: #{_adagae_forward_stacked.6} parent=15 // pred_check
        %p134 = pneg %p68
      $region22: #{_adagae_forward_stacked.6} parent=15 // pred_check_branch
        %136 = sbr.rel (%p134) target = $region24
      $region23: #{_adagae_forward_stacked.6} parent=15 // pred_region
        %p137 = scmp.lt.s32.totalorder %s15, 1
        %s138 = scalar_select %p137, %s15, 1
        %s139 = smul.addr %s138, 16
        %s140 = smul.addr %s139, 4
        %s141 = scalar_lea.vmem %s1, %s140
      $region24: #{_adagae_forward_stacked.6} parent=15 // pred_fallthru
        _
    $region16: #{_adagae_forward_stacked.6} parent=5 // pred_fallthru
      _
    %p142 = scmp.le.s32.totalorder 1, %s8
    %p143 = scmp.lt.s32.totalorder %s8, 3
    %p144 = pnand %p142, %p143
    %p145 = pneg %p144
    // Predicated region
    $region25: #{_adagae_forward_stacked.6} parent=5 // pred_check
      _
    $region26: #{_adagae_forward_stacked.6} parent=5 // pred_check_branch
      %147 = sbr.rel (%p144) target = $region28
    $region27: #{_adagae_forward_stacked.6} parent=5 // pred_region
      %s148 = ssub.s32 %s8, 1
      %s149 = smul.u32 16, %s18
      %p150 = scmp.lt.s32.totalorder %s17, 1
      %s151 = scalar_select %p150, %s17, 1
      %p152 = scmp.lt.s32.totalorder %s149, 15
      %s153 = scalar_select %p152, %s149, 15
      %s154 = smul.addr %s151, 16
      %s155 = sadd.s32 %s153, %s154
      %s156 = smul.addr %s155, 4
      %s157 = scalar_lea.vmem %s0, %s156
      %p158 = pneg %p48
      %p159 = pneg %p45
      %p160 = scmp.lt.s32.totalorder %s17, 1
      %s161 = scalar_select %p160, %s17, 1
      %s162 = smul.addr %s161, 16
      %s163 = smul.addr %s162, 4
      %s164 = scalar_lea.vmem %s1, %s163
      %p165 = pneg %p74
      %p166 = pneg %p71
      %p167 = pneg %p102
      %p168 = pneg %p99
      %s169 = smul.u32 16, %s18
      %p170 = scmp.lt.s32.totalorder %s17, 1
      %s171 = scalar_select %p170, %s17, 1
      %p172 = scmp.lt.s32.totalorder %s169, 15
      %s173 = scalar_select %p172, %s169, 15
      %s174 = smul.addr %s171, 16
      %s175 = sadd.s32 %s173, %s174
      %s176 = smul.addr %s175, 4
      %s177 = scalar_lea.vmem %s2, %s176
      %s178 = smul.u32 16, %s18
      %p179 = scmp.lt.s32.totalorder %s17, 1
      %s180 = scalar_select %p179, %s17, 1
      %p181 = scmp.lt.s32.totalorder %s178, 15
      %s182 = scalar_select %p181, %s178, 15
      %s183 = smul.addr %s180, 16
      %s184 = sadd.s32 %s182, %s183
      %s185 = smul.addr %s184, 4
      %s186 = scalar_lea.vmem %s0, %s185
      %s187 = smul.u32 16, %s18
      %p188 = scmp.lt.s32.totalorder %s17, 1
      %s189 = scalar_select %p188, %s17, 1
      %s190 = smul.addr %s189, 16
      %s191 = smul.addr %s190, 4
      %s192 = scalar_lea.vmem %s1, %s191
      %s193 = smul.u32 16, %s18
      %p194 = scmp.lt.s32.totalorder %s17, 1
      %s195 = scalar_select %p194, %s17, 1
      %p196 = scmp.lt.s32.totalorder %s193, 15
      %s197 = scalar_select %p196, %s193, 15
      %s198 = smul.addr %s195, 16
      %s199 = sadd.s32 %s197, %s198
      %s200 = smul.addr %s199, 4
      %s201 = scalar_lea.vmem %s2, %s200
      %s202 = smul.u32 16, %s18
      %v204 = vld [vmem:[%s186] sm:$0xf]
      %v205 = vld [vmem:[%s186 + $0x4] sm:$0xf]
      %v206 = vld [vmem:[%s186 + $0x8] sm:$0xf]
      %v207 = vld [vmem:[%s186 + $0xc] sm:$0xf]
      %v208 = vld [vmem:[%s186 + $0x10] sm:$0xf]
      %v209 = vld [vmem:[%s186 + $0x14] sm:$0xf]
      %v210 = vld [vmem:[%s186 + $0x18] sm:$0xf]
      %v211 = vld [vmem:[%s186 + $0x1c] sm:$0xf]
      %v212 = vld [vmem:[%s186 + $0x20] sm:$0xf]
      %v213 = vld [vmem:[%s186 + $0x24] sm:$0xf]
      %v214 = vld [vmem:[%s186 + $0x28] sm:$0xf]
      %v215 = vld [vmem:[%s186 + $0x2c] sm:$0xf]
      %v216 = vld [vmem:[%s186 + $0x30] sm:$0xf]
      %v217 = vld [vmem:[%s186 + $0x34] sm:$0xf]
      %v218 = vld [vmem:[%s186 + $0x38] sm:$0xf]
      %v219 = vld [vmem:[%s186 + $0x3c] sm:$0xf]
      %v220 = vld [vmem:[%s192] sm:$0xf]
      %v221 = vld [vmem:[%s192 + $0x4] sm:$0xf]
      %v222 = vld [vmem:[%s192 + $0x8] sm:$0xf]
      %v223 = vld [vmem:[%s192 + $0xc] sm:$0xf]
      %v224 = vld [vmem:[%s192 + $0x10] sm:$0xf]
      %v225 = vld [vmem:[%s192 + $0x14] sm:$0xf]
      %v226 = vld [vmem:[%s192 + $0x18] sm:$0xf]
      %v227 = vld [vmem:[%s192 + $0x1c] sm:$0xf]
      %v228 = vld [vmem:[%s192 + $0x20] sm:$0xf]
      %v229 = vld [vmem:[%s192 + $0x24] sm:$0xf]
      %v230 = vld [vmem:[%s192 + $0x28] sm:$0xf]
      %v231 = vld [vmem:[%s192 + $0x2c] sm:$0xf]
      %v232 = vld [vmem:[%s192 + $0x30] sm:$0xf]
      %v233 = vld [vmem:[%s192 + $0x34] sm:$0xf]
      %v234 = vld [vmem:[%s192 + $0x38] sm:$0xf]
      %v235 = vld [vmem:[%s192 + $0x3c] sm:$0xf]
      %v252 = vunpack.c.l.b16 %v204
      %v253 = vunpack.c.l.b16 %v205
      %v254 = vunpack.c.l.b16 %v206
      %v255 = vunpack.c.l.b16 %v207
      %v256 = vunpack.c.l.b16 %v208
      %v257 = vunpack.c.l.b16 %v209
      %v258 = vunpack.c.l.b16 %v210
      %v259 = vunpack.c.l.b16 %v211
      %v260 = vunpack.c.l.b16 %v212
      %v261 = vunpack.c.l.b16 %v213
      %v262 = vunpack.c.l.b16 %v214
      %v263 = vunpack.c.l.b16 %v215
      %v264 = vunpack.c.l.b16 %v216
      %v265 = vunpack.c.l.b16 %v217
      %v266 = vunpack.c.l.b16 %v218
      %v267 = vunpack.c.l.b16 %v219
      %v268 = vpack.c.b16 %v253, %v252
      %v269 = vpack.c.b16 %v255, %v254
      %v270 = vpack.c.b16 %v257, %v256
      %v271 = vpack.c.b16 %v259, %v258
      %v272 = vpack.c.b16 %v261, %v260
      %v273 = vpack.c.b16 %v263, %v262
      %v274 = vpack.c.b16 %v265, %v264
      %v275 = vpack.c.b16 %v267, %v266
      %v300 = vunpack.c.l.b16 %v220
      %v301 = vunpack.c.l.b16 %v221
      %v302 = vunpack.c.l.b16 %v222
      %v303 = vunpack.c.l.b16 %v223
      %v304 = vunpack.c.l.b16 %v224
      %v305 = vunpack.c.l.b16 %v225
      %v306 = vunpack.c.l.b16 %v226
      %v307 = vunpack.c.l.b16 %v227
      %v308 = vunpack.c.l.b16 %v228
      %v309 = vunpack.c.l.b16 %v229
      %v310 = vunpack.c.l.b16 %v230
      %v311 = vunpack.c.l.b16 %v231
      %v312 = vunpack.c.l.b16 %v232
      %v313 = vunpack.c.l.b16 %v233
      %v314 = vunpack.c.l.b16 %v234
      %v315 = vunpack.c.l.b16 %v235
      %v316 = vpack.c.b16 %v301, %v300
      %v317 = vpack.c.b16 %v303, %v302
      %v318 = vpack.c.b16 %v305, %v304
      %v319 = vpack.c.b16 %v307, %v306
      %v320 = vpack.c.b16 %v309, %v308
      %v321 = vpack.c.b16 %v311, %v310
      %v322 = vpack.c.b16 %v313, %v312
      %v323 = vpack.c.b16 %v315, %v314
      %332 = vmatprep.subr.bf16.mxu0 0
      %333 = vmatpush1.bf16.msra.mxu0 %v316
      %334 = vmatprep.subr.bf16.mxu0 0
      %335 = vmatpush1.bf16.msra.mxu0 %v317
      %336 = vmatprep.subr.bf16.mxu0 0
      %337 = vmatpush1.bf16.msra.mxu0 %v318
      %338 = vmatprep.subr.bf16.mxu0 0
      %339 = vmatpush1.bf16.msra.mxu0 %v319
      %340 = vmatprep.subr.bf16.mxu0 0
      %341 = vmatpush1.bf16.msra.mxu0 %v320
      %342 = vmatprep.subr.bf16.mxu0 0
      %343 = vmatpush1.bf16.msra.mxu0 %v321
      %344 = vmatprep.subr.bf16.mxu0 0
      %345 = vmatpush1.bf16.msra.mxu0 %v322
      %346 = vmatprep.subr.bf16.mxu0 0
      %347 = vmatpush1.bf16.msra.mxu0 %v323
      %348 = vmatprep.subr.bf16.mxu0 0
      %349 = vmatpush1.bf16.msra.mxu0 0
      %350 = vmatprep.subr.bf16.mxu0 0
      %351 = vmatpush1.bf16.msra.mxu0 0
      %352 = vmatprep.subr.bf16.mxu0 0
      %353 = vmatpush1.bf16.msra.mxu0 0
      %354 = vmatprep.subr.bf16.mxu0 0
      %355 = vmatpush1.bf16.msra.mxu0 0
      %356 = vmatprep.subr.bf16.mxu0 0
      %357 = vmatpush1.bf16.msra.mxu0 0
      %358 = vmatprep.subr.bf16.mxu0 0
      %359 = vmatpush1.bf16.msra.mxu0 0
      %360 = vmatprep.subr.bf16.mxu0 0
      %361 = vmatpush1.bf16.msra.mxu0 0
      %362 = vmatprep.subr.bf16.mxu0 0
      %363 = vmatpush1.bf16.msra.mxu0 0
      %364 = vmatprep.mubr.bf16.mxu0 0
      %365 = vmatmul.mubr.bf16.gmra.mrb[0].mxu0 %v268
      %v366 = vpop.f32.mrb[0].mxu0
      %v367 = vadd.f32 0.0, %v366
      %v368 = vpop.f32.mrb[0].mxu0
      %v369 = vpop.f32.mrb[0].mxu0
      %v370 = vadd.f32 0.0, %v369
      %v371 = vpop.f32.mrb[0].mxu0
      %372 = vmatprep.mubr.bf16.mxu0 0
      %373 = vmatmul.mubr.bf16.gmra.mrb[0].mxu0 %v269
      %v374 = vpop.f32.mrb[0].mxu0
      %v375 = vadd.f32 0.0, %v374
      %v376 = vpop.f32.mrb[0].mxu0
      %v377 = vpop.f32.mrb[0].mxu0
      %v378 = vadd.f32 0.0, %v377
      %v379 = vpop.f32.mrb[0].mxu0
      %380 = vmatprep.mubr.bf16.mxu0 0
      %381 = vmatmul.mubr.bf16.gmra.mrb[0].mxu0 %v270
      %v382 = vpop.f32.mrb[0].mxu0
      %v383 = vadd.f32 0.0, %v382
      %v384 = vpop.f32.mrb[0].mxu0
      %v385 = vpop.f32.mrb[0].mxu0
      %v386 = vadd.f32 0.0, %v385
      %v387 = vpop.f32.mrb[0].mxu0
      %388 = vmatprep.mubr.bf16.mxu0 0
      %389 = vmatmul.mubr.bf16.gmra.mrb[0].mxu0 %v271
      %v390 = vpop.f32.mrb[0].mxu0
      %v391 = vadd.f32 0.0, %v390
      %v392 = vpop.f32.mrb[0].mxu0
      %v393 = vpop.f32.mrb[0].mxu0
      %v394 = vadd.f32 0.0, %v393
      %v395 = vpop.f32.mrb[0].mxu0
      %396 = vmatprep.mubr.bf16.mxu0 0
      %397 = vmatmul.mubr.bf16.gmra.mrb[0].mxu0 %v272
      %v398 = vpop.f32.mrb[0].mxu0
      %v399 = vadd.f32 0.0, %v398
      %v400 = vpop.f32.mrb[0].mxu0
      %v401 = vpop.f32.mrb[0].mxu0
      %v402 = vadd.f32 0.0, %v401
      %v403 = vpop.f32.mrb[0].mxu0
      %404 = vmatprep.mubr.bf16.mxu0 0
      %405 = vmatmul.mubr.bf16.gmra.mrb[0].mxu0 %v273
      %v406 = vpop.f32.mrb[0].mxu0
      %v407 = vadd.f32 0.0, %v406
      %v408 = vpop.f32.mrb[0].mxu0
      %v409 = vpop.f32.mrb[0].mxu0
      %v410 = vadd.f32 0.0, %v409
      %v411 = vpop.f32.mrb[0].mxu0
      %412 = vmatprep.mubr.bf16.mxu0 0
      %413 = vmatmul.mubr.bf16.gmra.mrb[0].mxu0 %v274
      %v414 = vpop.f32.mrb[0].mxu0
      %v415 = vadd.f32 0.0, %v414
      %v416 = vpop.f32.mrb[0].mxu0
      %v417 = vpop.f32.mrb[0].mxu0
      %v418 = vadd.f32 0.0, %v417
      %v419 = vpop.f32.mrb[0].mxu0
      %420 = vmatprep.mubr.bf16.mxu0 0
      %421 = vmatmul.mubr.bf16.gmra.mrb[0].mxu0 %v275
      %v422 = vpop.f32.mrb[0].mxu0
      %v423 = vadd.f32 0.0, %v422
      %v424 = vpop.f32.mrb[0].mxu0
      %v425 = vpop.f32.mrb[0].mxu0
      %v426 = vadd.f32 0.0, %v425
      %v427 = vpop.f32.mrb[0].mxu0
      %428 = vdwg.mxu0
      %v429 = vmax.f32 %v367, 0.0
      %v430 = vmax.f32 %v370, 0.0
      %v431 = vmax.f32 %v375, 0.0
      %v432 = vmax.f32 %v378, 0.0
      %v433 = vmax.f32 %v383, 0.0
      %v434 = vmax.f32 %v386, 0.0
      %v435 = vmax.f32 %v391, 0.0
      %v436 = vmax.f32 %v394, 0.0
      %v437 = vmax.f32 %v399, 0.0
      %v438 = vmax.f32 %v402, 0.0
      %v439 = vmax.f32 %v407, 0.0
      %v440 = vmax.f32 %v410, 0.0
      %v441 = vmax.f32 %v415, 0.0
      %v442 = vmax.f32 %v418, 0.0
      %v443 = vmax.f32 %v423, 0.0
      %v444 = vmax.f32 %v426, 0.0
      %v445 = vpack.c.bf16 %v430, %v429
      %v446 = vpack.c.bf16 %v432, %v431
      %v447 = vpack.c.bf16 %v434, %v433
      %v448 = vpack.c.bf16 %v436, %v435
      %v449 = vpack.c.bf16 %v438, %v437
      %v450 = vpack.c.bf16 %v440, %v439
      %v451 = vpack.c.bf16 %v442, %v441
      %v452 = vpack.c.bf16 %v444, %v443
      %v461 = vunpack.c.l.b16 %v445
      %v462 = vunpack.c.h.b16 %v445
      %v463 = vunpack.c.l.b16 %v446
      %v464 = vunpack.c.h.b16 %v446
      %v465 = vunpack.c.l.b16 %v447
      %v466 = vunpack.c.h.b16 %v447
      %v467 = vunpack.c.l.b16 %v448
      %v468 = vunpack.c.h.b16 %v448
      %v469 = vunpack.c.l.b16 %v449
      %v470 = vunpack.c.h.b16 %v449
      %v471 = vunpack.c.l.b16 %v450
      %v472 = vunpack.c.h.b16 %v450
      %v473 = vunpack.c.l.b16 %v451
      %v474 = vunpack.c.h.b16 %v451
      %v475 = vunpack.c.l.b16 %v452
      %v476 = vunpack.c.h.b16 %v452
      %v477 = vpack.c.b16 %v461, %v461
      %v478 = vpack.c.b16 %v462, %v462
      %v479 = vpack.c.b16 %v463, %v463
      %v480 = vpack.c.b16 %v464, %v464
      %v481 = vpack.c.b16 %v465, %v465
      %v482 = vpack.c.b16 %v466, %v466
      %v483 = vpack.c.b16 %v467, %v467
      %v484 = vpack.c.b16 %v468, %v468
      %v485 = vpack.c.b16 %v469, %v469
      %v486 = vpack.c.b16 %v470, %v470
      %v487 = vpack.c.b16 %v471, %v471
      %v488 = vpack.c.b16 %v472, %v472
      %v489 = vpack.c.b16 %v473, %v473
      %v490 = vpack.c.b16 %v474, %v474
      %v491 = vpack.c.b16 %v475, %v475
      %v492 = vpack.c.b16 %v476, %v476
      %509 = vst [vmem:[%s201] sm:$0xf] %v477
      %510 = vst [vmem:[%s201 + $0x4] sm:$0xf] %v478
      %511 = vst [vmem:[%s201 + $0x8] sm:$0xf] %v479
      %512 = vst [vmem:[%s201 + $0xc] sm:$0xf] %v480
      %513 = vst [vmem:[%s201 + $0x10] sm:$0xf] %v481
      %514 = vst [vmem:[%s201 + $0x14] sm:$0xf] %v482
      %515 = vst [vmem:[%s201 + $0x18] sm:$0xf] %v483
      %516 = vst [vmem:[%s201 + $0x1c] sm:$0xf] %v484
      %517 = vst [vmem:[%s201 + $0x20] sm:$0xf] %v485
      %518 = vst [vmem:[%s201 + $0x24] sm:$0xf] %v486
      %519 = vst [vmem:[%s201 + $0x28] sm:$0xf] %v487
      %520 = vst [vmem:[%s201 + $0x2c] sm:$0xf] %v488
      %521 = vst [vmem:[%s201 + $0x30] sm:$0xf] %v489
      %522 = vst [vmem:[%s201 + $0x34] sm:$0xf] %v490
      %523 = vst [vmem:[%s201 + $0x38] sm:$0xf] %v491
      %524 = vst [vmem:[%s201 + $0x3c] sm:$0xf] %v492
      %s525 = smul.u32 16, %s18
      %p526 = scmp.lt.s32.totalorder %s17, 1
      %s527 = scalar_select %p526, %s17, 1
      %p528 = scmp.lt.s32.totalorder %s525, 15
      %s529 = scalar_select %p528, %s525, 15
      %s530 = smul.addr %s527, 16
      %s531 = sadd.s32 %s529, %s530
      %s532 = smul.addr %s531, 4
      %s533 = scalar_lea.vmem %s2, %s532
      // Predicated region
      $region29: #{_adagae_forward_stacked.6} parent=27 // pred_check
        %p534 = pneg %p99
      $region30: #{_adagae_forward_stacked.6} parent=27 // pred_check_branch
        %536 = sbr.rel (%p534) target = $region32
      $region31: #{_adagae_forward_stacked.6} parent=27 // pred_region
        %s537 = smul.u32 16, %s18
      $region32: #{_adagae_forward_stacked.6} parent=27 // pred_fallthru
        _
    $region28: #{_adagae_forward_stacked.6} parent=5 // pred_fallthru
      _
    %p538 = scmp.le.s32.totalorder 2, %s8
    // Predicated region
    $region33: #{_adagae_forward_stacked.6} parent=5 // pred_check
      %p539 = pneg %p538
    $region34: #{_adagae_forward_stacked.6} parent=5 // pred_check_branch
      %541 = sbr.rel (%p539) target = $region36
    $region35: #{_adagae_forward_stacked.6} parent=5 // pred_region
      %s542 = ssub.s32 %s8, 2
      // Predicated region
      $region37: #{_adagae_forward_stacked.6} parent=35 // pred_check
        %p543 = pneg %p105
      $region38: #{_adagae_forward_stacked.6} parent=35 // pred_check_branch
        %545 = sbr.rel (%p543) target = $region40
      $region39: #{_adagae_forward_stacked.6} parent=35 // pred_region
        %s546 = smul.u32 16, %s20
        %p547 = scmp.lt.s32.totalorder %s19, 1
        %s548 = scalar_select %p547, %s19, 1
        %p549 = scmp.lt.s32.totalorder %s546, 15
        %s550 = scalar_select %p549, %s546, 15
        %s551 = smul.addr %s548, 16
        %s552 = sadd.s32 %s550, %s551
        %s553 = smul.addr %s552, 4
        %s554 = scalar_lea.vmem %s2, %s553
      $region40: #{_adagae_forward_stacked.6} parent=35 // pred_fallthru
        _
    $region36: #{_adagae_forward_stacked.6} parent=5 // pred_fallthru
      _
  $region6: #{_adagae_forward_stacked.6} parent=0 // loop_footer
    %s12 = sadd.s32 1, %s8
  $region7: #{_adagae_forward_stacked.6} parent=0 // loop_footer_branch
    %7 = sbr.rel target = $region3
  $region8: #{_adagae_forward_stacked.6} parent=0 // loop_exit
    _

// kernel: _adagae_forward_stacked.5
$region0: #{_adagae_forward_stacked.5}
  #allocation0 [shape = 'u32[]', space=smem, size = 0x4, offset = 0x4, fixed_abs, tag = 'smem constant byte address 0x4 - core index']
  #allocation1 [shape = 'u32[144,128]{1,0:T(1,128)}', space=vmem, size = 0x12000, scoped, tag = 'internal scratch']
  %s0 = inlined_call_operand.vmem [shape: bf16[2,128,128], index: 0, kind: input, shape index: {}]
  %s1 = inlined_call_operand.vmem [shape: bf16[2,128,128], index: 1, kind: input, shape index: {}]
  %s2 = inlined_call_operand.vmem [shape: bf16[2,128,128], index: 2, kind: output, shape index: {}]
  %s3 = sld [smem:[#allocation0]]
  $region41: #{_adagae_forward_stacked.5} parent=0
    _
  %s5 = ssub.s32 1, %s3
  %s6 = scalar_select 0, %s5, %s3
  loop: start=0, step=1, limit=4
  $region2: #{_adagae_forward_stacked.5} parent=0 // loop_pre_header
    _
  $region3: #{_adagae_forward_stacked.5} parent=0 // loop_header
    %s8 = sphi 0, %s12
    %p9 = scmp.ge.s32.totalorder %s8, 4
    %s15 = sphi 0, %s27
    %s16 = sphi 0, %s23
    %s17 = sphi 0, %s15
    %s18 = sphi 0, %s16
    %s19 = sphi 0, %s17
    %s20 = sphi 0, %s18
    %s32 = sphi 0, %s34
    %s35 = sphi 0, %s32
    %s36 = sphi 0, %s35
    %s52 = sphi 0, %s36
    %s58 = sphi 0, %s60
    %s61 = sphi 0, %s58
    %s62 = sphi 0, %s61
    %s78 = sphi 0, %s62
    %s86 = sphi 0, %s88
    %s89 = sphi 0, %s86
    %s90 = sphi 0, %s89
    %s106 = sphi 0, %s90
  $region4: #{_adagae_forward_stacked.5} parent=0 // loop_header_branch
    %11 = sbr.rel (%p9) target = $region8
  $region5: #{_adagae_forward_stacked.5} parent=0 // loop_body
    %s13 = ssub.s32 %s8, 1
    %s14 = ssub.s32 %s8, 2
    %s21 = sadd.s32 1, %s16
    %p22 = scmp.ge.s32.totalorder %s21, 1
    %s23 = scalar_select %p22, 0, %s21
    %s24 = sadd.s32 1, %s15
    %s25 = scalar_select %p22, %s24, %s15
    %p26 = scmp.ge.s32.totalorder %s25, 2
    %s27 = scalar_select %p26, 0, %s25
    %s28 = ssub.s32 %s15, %s27
    %s29 = ssub.s32 %s16, %s23
    %s30 = sor.u32 %s28, %s29
    %p31 = scmp.eq.s32.totalorder %s30, 0
    %s33 = sadd.s32 %s32, 1
    %s34 = scalar_select %p31, %s32, %s33
    %p37 = pneg %p31
    %p38 = scmp.eq.s32.totalorder %s8, 1
    %p39 = por %p37, %p38
    %p40 = scmp.ne.s32.totalorder %s32, %s35
    %p41 = scmp.eq.s32.totalorder %s8, 0
    %p42 = por %p40, %p41
    %p43 = scmp.ne.s32.totalorder %s32, %s35
    %p44 = scmp.eq.s32.totalorder %s13, 1
    %p45 = por %p43, %p44
    %p46 = scmp.ne.s32.totalorder %s35, %s36
    %p47 = scmp.eq.s32.totalorder %s13, 0
    %p48 = por %p46, %p47
    %p49 = scmp.ne.s32.totalorder %s35, %s36
    %p50 = scmp.eq.s32.totalorder %s14, 1
    %p51 = por %p49, %p50
    %p53 = scmp.ne.s32.totalorder %s36, %s52
    %p54 = scmp.eq.s32.totalorder %s14, 0
    %p55 = por %p53, %p54
    %s56 = ssub.s32 %s15, %s27
    %p57 = scmp.eq.s32.totalorder %s56, 0
    %s59 = sadd.s32 %s58, 1
    %s60 = scalar_select %p57, %s58, %s59
    %p63 = pneg %p57
    %p64 = scmp.eq.s32.totalorder %s8, 1
    %p65 = por %p63, %p64
    %p66 = scmp.ne.s32.totalorder %s58, %s61
    %p67 = scmp.eq.s32.totalorder %s8, 0
    %p68 = por %p66, %p67
    %p69 = scmp.ne.s32.totalorder %s58, %s61
    %p70 = scmp.eq.s32.totalorder %s13, 1
    %p71 = por %p69, %p70
    %p72 = scmp.ne.s32.totalorder %s61, %s62
    %p73 = scmp.eq.s32.totalorder %s13, 0
    %p74 = por %p72, %p73
    %p75 = scmp.ne.s32.totalorder %s61, %s62
    %p76 = scmp.eq.s32.totalorder %s14, 1
    %p77 = por %p75, %p76
    %p79 = scmp.ne.s32.totalorder %s62, %s78
    %p80 = scmp.eq.s32.totalorder %s14, 0
    %p81 = por %p79, %p80
    %s82 = ssub.s32 %s15, %s27
    %s83 = ssub.s32 %s16, %s23
    %s84 = sor.u32 %s82, %s83
    %p85 = scmp.eq.s32.totalorder %s84, 0
    %s87 = sadd.s32 %s86, 1
    %s88 = scalar_select %p85, %s86, %s87
    %p91 = pneg %p85
    %p92 = scmp.eq.s32.totalorder %s8, 1
    %p93 = por %p91, %p92
    %p94 = scmp.ne.s32.totalorder %s86, %s89
    %p95 = scmp.eq.s32.totalorder %s8, 0
    %p96 = por %p94, %p95
    %p97 = scmp.ne.s32.totalorder %s86, %s89
    %p98 = scmp.eq.s32.totalorder %s13, 1
    %p99 = por %p97, %p98
    %p100 = scmp.ne.s32.totalorder %s89, %s90
    %p101 = scmp.eq.s32.totalorder %s13, 0
    %p102 = por %p100, %p101
    %p103 = scmp.ne.s32.totalorder %s89, %s90
    %p104 = scmp.eq.s32.totalorder %s14, 1
    %p105 = por %p103, %p104
    %p107 = scmp.ne.s32.totalorder %s90, %s106
    %p108 = scmp.eq.s32.totalorder %s14, 0
    %p109 = por %p107, %p108
    %p110 = scmp.le.s32.totalorder 1, %s8
    %p111 = scmp.lt.s32.totalorder %s8, 3
    %p112 = pnand %p110, %p111
    %p113 = pneg %p112
    // Predicated region
    $region9: #{_adagae_forward_stacked.5} parent=5 // pred_check
      _
    $region10: #{_adagae_forward_stacked.5} parent=5 // pred_check_branch
      %115 = sbr.rel (%p112) target = $region12
    $region11: #{_adagae_forward_stacked.5} parent=5 // pred_region
      %s116 = ssub.s32 %s8, 1
    $region12: #{_adagae_forward_stacked.5} parent=5 // pred_fallthru
      _
    %p117 = scmp.lt.s32.totalorder %s8, 2
    // Predicated region
    $region13: #{_adagae_forward_stacked.5} parent=5 // pred_check
      %p118 = pneg %p117
    $region14: #{_adagae_forward_stacked.5} parent=5 // pred_check_branch
      %120 = sbr.rel (%p118) target = $region16
    $region15: #{_adagae_forward_stacked.5} parent=5 // pred_region
      // Predicated region
      $region17: #{_adagae_forward_stacked.5} parent=15 // pred_check
        %p121 = pneg %p42
      $region18: #{_adagae_forward_stacked.5} parent=15 // pred_check_branch
        %123 = sbr.rel (%p121) target = $region20
      $region19: #{_adagae_forward_stacked.5} parent=15 // pred_region
        %s124 = smul.u32 16, %s16
        %p125 = scmp.lt.s32.totalorder %s15, 1
        %s126 = scalar_select %p125, %s15, 1
        %p127 = scmp.lt.s32.totalorder %s124, 15
        %s128 = scalar_select %p127, %s124, 15
        %s129 = smul.addr %s126, 16
        %s130 = sadd.s32 %s128, %s129
        %s131 = smul.addr %s130, 4
        %s132 = scalar_lea.vmem %s0, %s131
        %s133 = smul.u32 16, %s16
      $region20: #{_adagae_forward_stacked.5} parent=15 // pred_fallthru
        _
      // Predicated region
      $region21: #{_adagae_forward_stacked.5} parent=15 // pred_check
        %p134 = pneg %p68
      $region22: #{_adagae_forward_stacked.5} parent=15 // pred_check_branch
        %136 = sbr.rel (%p134) target = $region24
      $region23: #{_adagae_forward_stacked.5} parent=15 // pred_region
        %p137 = scmp.lt.s32.totalorder %s15, 1
        %s138 = scalar_select %p137, %s15, 1
        %s139 = smul.addr %s138, 16
        %s140 = smul.addr %s139, 4
        %s141 = scalar_lea.vmem %s1, %s140
      $region24: #{_adagae_forward_stacked.5} parent=15 // pred_fallthru
        _
    $region16: #{_adagae_forward_stacked.5} parent=5 // pred_fallthru
      _
    %p142 = scmp.le.s32.totalorder 1, %s8
    %p143 = scmp.lt.s32.totalorder %s8, 3
    %p144 = pnand %p142, %p143
    %p145 = pneg %p144
    // Predicated region
    $region25: #{_adagae_forward_stacked.5} parent=5 // pred_check
      _
    $region26: #{_adagae_forward_stacked.5} parent=5 // pred_check_branch
      %147 = sbr.rel (%p144) target = $region28
    $region27: #{_adagae_forward_stacked.5} parent=5 // pred_region
      %s148 = ssub.s32 %s8, 1
      %s149 = smul.u32 16, %s18
      %p150 = scmp.lt.s32.totalorder %s17, 1
      %s151 = scalar_select %p150, %s17, 1
      %p152 = scmp.lt.s32.totalorder %s149, 15
      %s153 = scalar_select %p152, %s149, 15
      %s154 = smul.addr %s151, 16
      %s155 = sadd.s32 %s153, %s154
      %s156 = smul.addr %s155, 4
      %s157 = scalar_lea.vmem %s0, %s156
      %p158 = pneg %p48
      %p159 = pneg %p45
      %p160 = scmp.lt.s32.totalorder %s17, 1
      %s161 = scalar_select %p160, %s17, 1
      %s162 = smul.addr %s161, 16
      %s163 = smul.addr %s162, 4
      %s164 = scalar_lea.vmem %s1, %s163
      %p165 = pneg %p74
      %p166 = pneg %p71
      %p167 = pneg %p102
      %p168 = pneg %p99
      %s169 = smul.u32 16, %s18
      %p170 = scmp.lt.s32.totalorder %s17, 1
      %s171 = scalar_select %p170, %s17, 1
      %p172 = scmp.lt.s32.totalorder %s169, 15
      %s173 = scalar_select %p172, %s169, 15
      %s174 = smul.addr %s171, 16
      %s175 = sadd.s32 %s173, %s174
      %s176 = smul.addr %s175, 4
      %s177 = scalar_lea.vmem %s2, %s176
      %s178 = smul.u32 16, %s18
      %p179 = scmp.lt.s32.totalorder %s17, 1
      %s180 = scalar_select %p179, %s17, 1
      %p181 = scmp.lt.s32.totalorder %s178, 15
      %s182 = scalar_select %p181, %s178, 15
      %s183 = smul.addr %s180, 16
      %s184 = sadd.s32 %s182, %s183
      %s185 = smul.addr %s184, 4
      %s186 = scalar_lea.vmem %s0, %s185
      %s187 = smul.u32 16, %s18
      %p188 = scmp.lt.s32.totalorder %s17, 1
      %s189 = scalar_select %p188, %s17, 1
      %s190 = smul.addr %s189, 16
      %s191 = smul.addr %s190, 4
      %s192 = scalar_lea.vmem %s1, %s191
      %s193 = smul.u32 16, %s18
      %p194 = scmp.lt.s32.totalorder %s17, 1
      %s195 = scalar_select %p194, %s17, 1
      %p196 = scmp.lt.s32.totalorder %s193, 15
      %s197 = scalar_select %p196, %s193, 15
      %s198 = smul.addr %s195, 16
      %s199 = sadd.s32 %s197, %s198
      %s200 = smul.addr %s199, 4
      %s201 = scalar_lea.vmem %s2, %s200
      %s202 = smul.u32 16, %s18
      %v204 = vld [vmem:[%s186] sm:$0xf]
      %v205 = vld [vmem:[%s186 + $0x4] sm:$0xf]
      %v206 = vld [vmem:[%s186 + $0x8] sm:$0xf]
      %v207 = vld [vmem:[%s186 + $0xc] sm:$0xf]
      %v208 = vld [vmem:[%s186 + $0x10] sm:$0xf]
      %v209 = vld [vmem:[%s186 + $0x14] sm:$0xf]
      %v210 = vld [vmem:[%s186 + $0x18] sm:$0xf]
      %v211 = vld [vmem:[%s186 + $0x1c] sm:$0xf]
      %v212 = vld [vmem:[%s186 + $0x20] sm:$0xf]
      %v213 = vld [vmem:[%s186 + $0x24] sm:$0xf]
      %v214 = vld [vmem:[%s186 + $0x28] sm:$0xf]
      %v215 = vld [vmem:[%s186 + $0x2c] sm:$0xf]
      %v216 = vld [vmem:[%s186 + $0x30] sm:$0xf]
      %v217 = vld [vmem:[%s186 + $0x34] sm:$0xf]
      %v218 = vld [vmem:[%s186 + $0x38] sm:$0xf]
      %v219 = vld [vmem:[%s186 + $0x3c] sm:$0xf]
      %v220 = vld [vmem:[%s192] sm:$0xf]
      %v221 = vld [vmem:[%s192 + $0x4] sm:$0xf]
      %v222 = vld [vmem:[%s192 + $0x8] sm:$0xf]
      %v223 = vld [vmem:[%s192 + $0xc] sm:$0xf]
      %v224 = vld [vmem:[%s192 + $0x10] sm:$0xf]
      %v225 = vld [vmem:[%s192 + $0x14] sm:$0xf]
      %v226 = vld [vmem:[%s192 + $0x18] sm:$0xf]
      %v227 = vld [vmem:[%s192 + $0x1c] sm:$0xf]
      %v228 = vld [vmem:[%s192 + $0x20] sm:$0xf]
      %v229 = vld [vmem:[%s192 + $0x24] sm:$0xf]
      %v230 = vld [vmem:[%s192 + $0x28] sm:$0xf]
      %v231 = vld [vmem:[%s192 + $0x2c] sm:$0xf]
      %v232 = vld [vmem:[%s192 + $0x30] sm:$0xf]
      %v233 = vld [vmem:[%s192 + $0x34] sm:$0xf]
      %v234 = vld [vmem:[%s192 + $0x38] sm:$0xf]
      %v235 = vld [vmem:[%s192 + $0x3c] sm:$0xf]
      %v252 = vunpack.c.l.b16 %v204
      %v253 = vunpack.c.l.b16 %v205
      %v254 = vunpack.c.l.b16 %v206
      %v255 = vunpack.c.l.b16 %v207
      %v256 = vunpack.c.l.b16 %v208
      %v257 = vunpack.c.l.b16 %v209
      %v258 = vunpack.c.l.b16 %v210
      %v259 = vunpack.c.l.b16 %v211
      %v260 = vunpack.c.l.b16 %v212
      %v261 = vunpack.c.l.b16 %v213
      %v262 = vunpack.c.l.b16 %v214
      %v263 = vunpack.c.l.b16 %v215
      %v264 = vunpack.c.l.b16 %v216
      %v265 = vunpack.c.l.b16 %v217
      %v266 = vunpack.c.l.b16 %v218
      %v267 = vunpack.c.l.b16 %v219
      %v268 = vpack.c.b16 %v253, %v252
      %v269 = vpack.c.b16 %v255, %v254
      %v270 = vpack.c.b16 %v257, %v256
      %v271 = vpack.c.b16 %v259, %v258
      %v272 = vpack.c.b16 %v261, %v260
      %v273 = vpack.c.b16 %v263, %v262
      %v274 = vpack.c.b16 %v265, %v264
      %v275 = vpack.c.b16 %v267, %v266
      %v300 = vunpack.c.l.b16 %v220
      %v301 = vunpack.c.l.b16 %v221
      %v302 = vunpack.c.l.b16 %v222
      %v303 = vunpack.c.l.b16 %v223
      %v304 = vunpack.c.l.b16 %v224
      %v305 = vunpack.c.l.b16 %v225
      %v306 = vunpack.c.l.b16 %v226
      %v307 = vunpack.c.l.b16 %v227
      %v308 = vunpack.c.l.b16 %v228
      %v309 = vunpack.c.l.b16 %v229
      %v310 = vunpack.c.l.b16 %v230
      %v311 = vunpack.c.l.b16 %v231
      %v312 = vunpack.c.l.b16 %v232
      %v313 = vunpack.c.l.b16 %v233
      %v314 = vunpack.c.l.b16 %v234
      %v315 = vunpack.c.l.b16 %v235
      %v316 = vpack.c.b16 %v301, %v300
      %v317 = vpack.c.b16 %v303, %v302
      %v318 = vpack.c.b16 %v305, %v304
      %v319 = vpack.c.b16 %v307, %v306
      %v320 = vpack.c.b16 %v309, %v308
      %v321 = vpack.c.b16 %v311, %v310
      %v322 = vpack.c.b16 %v313, %v312
      %v323 = vpack.c.b16 %v315, %v314
      %332 = vmatprep.subr.bf16.mxu0 0
      %333 = vmatpush1.bf16.msra.mxu0 %v316
      %334 = vmatprep.subr.bf16.mxu0 0
      %335 = vmatpush1.bf16.msra.mxu0 %v317
      %336 = vmatprep.subr.bf16.mxu0 0
      %337 = vmatpush1.bf16.msra.mxu0 %v318
      %338 = vmatprep.subr.bf16.mxu0 0
      %339 = vmatpush1.bf16.msra.mxu0 %v319
      %340 = vmatprep.subr.bf16.mxu0 0
      %341 = vmatpush1.bf16.msra.mxu0 %v320
      %342 = vmatprep.subr.bf16.mxu0 0
      %343 = vmatpush1.bf16.msra.mxu0 %v321
      %344 = vmatprep.subr.bf16.mxu0 0
      %345 = vmatpush1.bf16.msra.mxu0 %v322
      %346 = vmatprep.subr.bf16.mxu0 0
      %347 = vmatpush1.bf16.msra.mxu0 %v323
      %348 = vmatprep.subr.bf16.mxu0 0
      %349 = vmatpush1.bf16.msra.mxu0 0
      %350 = vmatprep.subr.bf16.mxu0 0
      %351 = vmatpush1.bf16.msra.mxu0 0
      %352 = vmatprep.subr.bf16.mxu0 0
      %353 = vmatpush1.bf16.msra.mxu0 0
      %354 = vmatprep.subr.bf16.mxu0 0
      %355 = vmatpush1.bf16.msra.mxu0 0
      %356 = vmatprep.subr.bf16.mxu0 0
      %357 = vmatpush1.bf16.msra.mxu0 0
      %358 = vmatprep.subr.bf16.mxu0 0
      %359 = vmatpush1.bf16.msra.mxu0 0
      %360 = vmatprep.subr.bf16.mxu0 0
      %361 = vmatpush1.bf16.msra.mxu0 0
      %362 = vmatprep.subr.bf16.mxu0 0
      %363 = vmatpush1.bf16.msra.mxu0 0
      %364 = vmatprep.mubr.bf16.mxu0 0
      %365 = vmatmul.mubr.bf16.gmra.mrb[0].mxu0 %v268
      %v366 = vpop.f32.mrb[0].mxu0
      %v367 = vadd.f32 0.0, %v366
      %v368 = vpop.f32.mrb[0].mxu0
      %v369 = vpop.f32.mrb[0].mxu0
      %v370 = vadd.f32 0.0, %v369
      %v371 = vpop.f32.mrb[0].mxu0
      %372 = vmatprep.mubr.bf16.mxu0 0
      %373 = vmatmul.mubr.bf16.gmra.mrb[0].mxu0 %v269
      %v374 = vpop.f32.mrb[0].mxu0
      %v375 = vadd.f32 0.0, %v374
      %v376 = vpop.f32.mrb[0].mxu0
      %v377 = vpop.f32.mrb[0].mxu0
      %v378 = vadd.f32 0.0, %v377
      %v379 = vpop.f32.mrb[0].mxu0
      %380 = vmatprep.mubr.bf16.mxu0 0
      %381 = vmatmul.mubr.bf16.gmra.mrb[0].mxu0 %v270
      %v382 = vpop.f32.mrb[0].mxu0
      %v383 = vadd.f32 0.0, %v382
      %v384 = vpop.f32.mrb[0].mxu0
      %v385 = vpop.f32.mrb[0].mxu0
      %v386 = vadd.f32 0.0, %v385
      %v387 = vpop.f32.mrb[0].mxu0
      %388 = vmatprep.mubr.bf16.mxu0 0
      %389 = vmatmul.mubr.bf16.gmra.mrb[0].mxu0 %v271
      %v390 = vpop.f32.mrb[0].mxu0
      %v391 = vadd.f32 0.0, %v390
      %v392 = vpop.f32.mrb[0].mxu0
      %v393 = vpop.f32.mrb[0].mxu0
      %v394 = vadd.f32 0.0, %v393
      %v395 = vpop.f32.mrb[0].mxu0
      %396 = vmatprep.mubr.bf16.mxu0 0
      %397 = vmatmul.mubr.bf16.gmra.mrb[0].mxu0 %v272
      %v398 = vpop.f32.mrb[0].mxu0
      %v399 = vadd.f32 0.0, %v398
      %v400 = vpop.f32.mrb[0].mxu0
      %v401 = vpop.f32.mrb[0].mxu0
      %v402 = vadd.f32 0.0, %v401
      %v403 = vpop.f32.mrb[0].mxu0
      %404 = vmatprep.mubr.bf16.mxu0 0
      %405 = vmatmul.mubr.bf16.gmra.mrb[0].mxu0 %v273
      %v406 = vpop.f32.mrb[0].mxu0
      %v407 = vadd.f32 0.0, %v406
      %v408 = vpop.f32.mrb[0].mxu0
      %v409 = vpop.f32.mrb[0].mxu0
      %v410 = vadd.f32 0.0, %v409
      %v411 = vpop.f32.mrb[0].mxu0
      %412 = vmatprep.mubr.bf16.mxu0 0
      %413 = vmatmul.mubr.bf16.gmra.mrb[0].mxu0 %v274
      %v414 = vpop.f32.mrb[0].mxu0
      %v415 = vadd.f32 0.0, %v414
      %v416 = vpop.f32.mrb[0].mxu0
      %v417 = vpop.f32.mrb[0].mxu0
      %v418 = vadd.f32 0.0, %v417
      %v419 = vpop.f32.mrb[0].mxu0
      %420 = vmatprep.mubr.bf16.mxu0 0
      %421 = vmatmul.mubr.bf16.gmra.mrb[0].mxu0 %v275
      %v422 = vpop.f32.mrb[0].mxu0
      %v423 = vadd.f32 0.0, %v422
      %v424 = vpop.f32.mrb[0].mxu0
      %v425 = vpop.f32.mrb[0].mxu0
      %v426 = vadd.f32 0.0, %v425
      %v427 = vpop.f32.mrb[0].mxu0
      %428 = vdwg.mxu0
      %v429 = vpack.c.bf16 %v370, %v367
      %v430 = vpack.c.bf16 %v378, %v375
      %v431 = vpack.c.bf16 %v386, %v383
      %v432 = vpack.c.bf16 %v394, %v391
      %v433 = vpack.c.bf16 %v402, %v399
      %v434 = vpack.c.bf16 %v410, %v407
      %v435 = vpack.c.bf16 %v418, %v415
      %v436 = vpack.c.bf16 %v426, %v423
      %v445 = vunpack.c.l.b16 %v429
      %v446 = vunpack.c.h.b16 %v429
      %v447 = vunpack.c.l.b16 %v430
      %v448 = vunpack.c.h.b16 %v430
      %v449 = vunpack.c.l.b16 %v431
      %v450 = vunpack.c.h.b16 %v431
      %v451 = vunpack.c.l.b16 %v432
      %v452 = vunpack.c.h.b16 %v432
      %v453 = vunpack.c.l.b16 %v433
      %v454 = vunpack.c.h.b16 %v433
      %v455 = vunpack.c.l.b16 %v434
      %v456 = vunpack.c.h.b16 %v434
      %v457 = vunpack.c.l.b16 %v435
      %v458 = vunpack.c.h.b16 %v435
      %v459 = vunpack.c.l.b16 %v436
      %v460 = vunpack.c.h.b16 %v436
      %v461 = vpack.c.b16 %v445, %v445
      %v462 = vpack.c.b16 %v446, %v446
      %v463 = vpack.c.b16 %v447, %v447
      %v464 = vpack.c.b16 %v448, %v448
      %v465 = vpack.c.b16 %v449, %v449
      %v466 = vpack.c.b16 %v450, %v450
      %v467 = vpack.c.b16 %v451, %v451
      %v468 = vpack.c.b16 %v452, %v452
      %v469 = vpack.c.b16 %v453, %v453
      %v470 = vpack.c.b16 %v454, %v454
      %v471 = vpack.c.b16 %v455, %v455
      %v472 = vpack.c.b16 %v456, %v456
      %v473 = vpack.c.b16 %v457, %v457
      %v474 = vpack.c.b16 %v458, %v458
      %v475 = vpack.c.b16 %v459, %v459
      %v476 = vpack.c.b16 %v460, %v460
      %493 = vst [vmem:[%s201] sm:$0xf] %v461
      %494 = vst [vmem:[%s201 + $0x4] sm:$0xf] %v462
      %495 = vst [vmem:[%s201 + $0x8] sm:$0xf] %v463
      %496 = vst [vmem:[%s201 + $0xc] sm:$0xf] %v464
      %497 = vst [vmem:[%s201 + $0x10] sm:$0xf] %v465
      %498 = vst [vmem:[%s201 + $0x14] sm:$0xf] %v466
      %499 = vst [vmem:[%s201 + $0x18] sm:$0xf] %v467
      %500 = vst [vmem:[%s201 + $0x1c] sm:$0xf] %v468
      %501 = vst [vmem:[%s201 + $0x20] sm:$0xf] %v469
      %502 = vst [vmem:[%s201 + $0x24] sm:$0xf] %v470
      %503 = vst [vmem:[%s201 + $0x28] sm:$0xf] %v471
      %504 = vst [vmem:[%s201 + $0x2c] sm:$0xf] %v472
      %505 = vst [vmem:[%s201 + $0x30] sm:$0xf] %v473
      %506 = vst [vmem:[%s201 + $0x34] sm:$0xf] %v474
      %507 = vst [vmem:[%s201 + $0x38] sm:$0xf] %v475
      %508 = vst [vmem:[%s201 + $0x3c] sm:$0xf] %v476
      %s509 = smul.u32 16, %s18
      %p510 = scmp.lt.s32.totalorder %s17, 1
      %s511 = scalar_select %p510, %s17, 1
      %p512 = scmp.lt.s32.totalorder %s509, 15
      %s513 = scalar_select %p512, %s509, 15
      %s514 = smul.addr %s511, 16
      %s515 = sadd.s32 %s513, %s514
      %s516 = smul.addr %s515, 4
      %s517 = scalar_lea.vmem %s2, %s516
      // Predicated region
      $region29: #{_adagae_forward_stacked.5} parent=27 // pred_check
        %p518 = pneg %p99
      $region30: #{_adagae_forward_stacked.5} parent=27 // pred_check_branch
        %520 = sbr.rel (%p518) target = $region32
      $region31: #{_adagae_forward_stacked.5} parent=27 // pred_region
        %s521 = smul.u32 16, %s18
      $region32: #{_adagae_forward_stacked.5} parent=27 // pred_fallthru
        _
    $region28: #{_adagae_forward_stacked.5} parent=5 // pred_fallthru
      _
    %p522 = scmp.le.s32.totalorder 2, %s8
    // Predicated region
    $region33: #{_adagae_forward_stacked.5} parent=5 // pred_check
      %p523 = pneg %p522
    $region34: #{_adagae_forward_stacked.5} parent=5 // pred_check_branch
      %525 = sbr.rel (%p523) target = $region36
    $region35: #{_adagae_forward_stacked.5} parent=5 // pred_region
      %s526 = ssub.s32 %s8, 2
      // Predicated region
      $region37: #{_adagae_forward_stacked.5} parent=35 // pred_check
        %p527 = pneg %p105
      $region38: #{_adagae_forward_stacked.5} parent=35 // pred_check_branch
        %529 = sbr.rel (%p527) target = $region40
      $region39: #{_adagae_forward_stacked.5} parent=35 // pred_region
        %s530 = smul.u32 16, %s20
        %p531 = scmp.lt.s32.totalorder %s19, 1
        %s532 = scalar_select %p531, %s19, 1
        %p533 = scmp.lt.s32.totalorder %s530, 15
        %s534 = scalar_select %p533, %s530, 15
        %s535 = smul.addr %s532, 16
        %s536 = sadd.s32 %s534, %s535
        %s537 = smul.addr %s536, 4
        %s538 = scalar_lea.vmem %s2, %s537
      $region40: #{_adagae_forward_stacked.5} parent=35 // pred_fallthru
        _
    $region36: #{_adagae_forward_stacked.5} parent=5 // pred_fallthru
      _
  $region6: #{_adagae_forward_stacked.5} parent=0 // loop_footer
    %s12 = sadd.s32 1, %s8
  $region7: #{_adagae_forward_stacked.5} parent=0 // loop_footer_branch
    %7 = sbr.rel target = $region3
  $region8: #{_adagae_forward_stacked.5} parent=0 // loop_exit
    _

// kernel: _adagae_forward_stacked.8
$region0: #{_adagae_forward_stacked.8}
  #allocation0 [shape = 'u32[]', space=smem, size = 0x4, offset = 0x4, fixed_abs, tag = 'smem constant byte address 0x4 - core index']
  #allocation1 [shape = 'u32[144,128]{1,0:T(1,128)}', space=vmem, size = 0x12000, scoped, tag = 'internal scratch']
  %s0 = inlined_call_operand.vmem [shape: bf16[2,128,128], index: 0, kind: input, shape index: {}]
  %s1 = inlined_call_operand.vmem [shape: bf16[2,128,128], index: 1, kind: input, shape index: {}]
  %s2 = inlined_call_operand.vmem [shape: f32[2,128,128], index: 2, kind: output, shape index: {}]
  %s3 = sld [smem:[#allocation0]]
  $region41: #{_adagae_forward_stacked.8} parent=0
    _
  %s5 = ssub.s32 1, %s3
  %s6 = scalar_select 0, %s5, %s3
  loop: start=0, step=1, limit=4
  $region2: #{_adagae_forward_stacked.8} parent=0 // loop_pre_header
    _
  $region3: #{_adagae_forward_stacked.8} parent=0 // loop_header
    %s8 = sphi 0, %s12
    %p9 = scmp.ge.s32.totalorder %s8, 4
    %s15 = sphi 0, %s27
    %s16 = sphi 0, %s23
    %s17 = sphi 0, %s15
    %s18 = sphi 0, %s16
    %s19 = sphi 0, %s17
    %s20 = sphi 0, %s18
    %s32 = sphi 0, %s34
    %s35 = sphi 0, %s32
    %s36 = sphi 0, %s35
    %s52 = sphi 0, %s36
    %s58 = sphi 0, %s60
    %s61 = sphi 0, %s58
    %s62 = sphi 0, %s61
    %s78 = sphi 0, %s62
    %s86 = sphi 0, %s88
    %s89 = sphi 0, %s86
    %s90 = sphi 0, %s89
    %s106 = sphi 0, %s90
  $region4: #{_adagae_forward_stacked.8} parent=0 // loop_header_branch
    %11 = sbr.rel (%p9) target = $region8
  $region5: #{_adagae_forward_stacked.8} parent=0 // loop_body
    %s13 = ssub.s32 %s8, 1
    %s14 = ssub.s32 %s8, 2
    %s21 = sadd.s32 1, %s16
    %p22 = scmp.ge.s32.totalorder %s21, 1
    %s23 = scalar_select %p22, 0, %s21
    %s24 = sadd.s32 1, %s15
    %s25 = scalar_select %p22, %s24, %s15
    %p26 = scmp.ge.s32.totalorder %s25, 2
    %s27 = scalar_select %p26, 0, %s25
    %s28 = ssub.s32 %s15, %s27
    %s29 = ssub.s32 %s16, %s23
    %s30 = sor.u32 %s28, %s29
    %p31 = scmp.eq.s32.totalorder %s30, 0
    %s33 = sadd.s32 %s32, 1
    %s34 = scalar_select %p31, %s32, %s33
    %p37 = pneg %p31
    %p38 = scmp.eq.s32.totalorder %s8, 1
    %p39 = por %p37, %p38
    %p40 = scmp.ne.s32.totalorder %s32, %s35
    %p41 = scmp.eq.s32.totalorder %s8, 0
    %p42 = por %p40, %p41
    %p43 = scmp.ne.s32.totalorder %s32, %s35
    %p44 = scmp.eq.s32.totalorder %s13, 1
    %p45 = por %p43, %p44
    %p46 = scmp.ne.s32.totalorder %s35, %s36
    %p47 = scmp.eq.s32.totalorder %s13, 0
    %p48 = por %p46, %p47
    %p49 = scmp.ne.s32.totalorder %s35, %s36
    %p50 = scmp.eq.s32.totalorder %s14, 1
    %p51 = por %p49, %p50
    %p53 = scmp.ne.s32.totalorder %s36, %s52
    %p54 = scmp.eq.s32.totalorder %s14, 0
    %p55 = por %p53, %p54
    %s56 = ssub.s32 %s15, %s27
    %p57 = scmp.eq.s32.totalorder %s56, 0
    %s59 = sadd.s32 %s58, 1
    %s60 = scalar_select %p57, %s58, %s59
    %p63 = pneg %p57
    %p64 = scmp.eq.s32.totalorder %s8, 1
    %p65 = por %p63, %p64
    %p66 = scmp.ne.s32.totalorder %s58, %s61
    %p67 = scmp.eq.s32.totalorder %s8, 0
    %p68 = por %p66, %p67
    %p69 = scmp.ne.s32.totalorder %s58, %s61
    %p70 = scmp.eq.s32.totalorder %s13, 1
    %p71 = por %p69, %p70
    %p72 = scmp.ne.s32.totalorder %s61, %s62
    %p73 = scmp.eq.s32.totalorder %s13, 0
    %p74 = por %p72, %p73
    %p75 = scmp.ne.s32.totalorder %s61, %s62
    %p76 = scmp.eq.s32.totalorder %s14, 1
    %p77 = por %p75, %p76
    %p79 = scmp.ne.s32.totalorder %s62, %s78
    %p80 = scmp.eq.s32.totalorder %s14, 0
    %p81 = por %p79, %p80
    %s82 = ssub.s32 %s15, %s27
    %s83 = ssub.s32 %s16, %s23
    %s84 = sor.u32 %s82, %s83
    %p85 = scmp.eq.s32.totalorder %s84, 0
    %s87 = sadd.s32 %s86, 1
    %s88 = scalar_select %p85, %s86, %s87
    %p91 = pneg %p85
    %p92 = scmp.eq.s32.totalorder %s8, 1
    %p93 = por %p91, %p92
    %p94 = scmp.ne.s32.totalorder %s86, %s89
    %p95 = scmp.eq.s32.totalorder %s8, 0
    %p96 = por %p94, %p95
    %p97 = scmp.ne.s32.totalorder %s86, %s89
    %p98 = scmp.eq.s32.totalorder %s13, 1
    %p99 = por %p97, %p98
    %p100 = scmp.ne.s32.totalorder %s89, %s90
    %p101 = scmp.eq.s32.totalorder %s13, 0
    %p102 = por %p100, %p101
    %p103 = scmp.ne.s32.totalorder %s89, %s90
    %p104 = scmp.eq.s32.totalorder %s14, 1
    %p105 = por %p103, %p104
    %p107 = scmp.ne.s32.totalorder %s90, %s106
    %p108 = scmp.eq.s32.totalorder %s14, 0
    %p109 = por %p107, %p108
    %p110 = scmp.le.s32.totalorder 1, %s8
    %p111 = scmp.lt.s32.totalorder %s8, 3
    %p112 = pnand %p110, %p111
    %p113 = pneg %p112
    // Predicated region
    $region9: #{_adagae_forward_stacked.8} parent=5 // pred_check
      _
    $region10: #{_adagae_forward_stacked.8} parent=5 // pred_check_branch
      %115 = sbr.rel (%p112) target = $region12
    $region11: #{_adagae_forward_stacked.8} parent=5 // pred_region
      %s116 = ssub.s32 %s8, 1
    $region12: #{_adagae_forward_stacked.8} parent=5 // pred_fallthru
      _
    %p117 = scmp.lt.s32.totalorder %s8, 2
    // Predicated region
    $region13: #{_adagae_forward_stacked.8} parent=5 // pred_check
      %p118 = pneg %p117
    $region14: #{_adagae_forward_stacked.8} parent=5 // pred_check_branch
      %120 = sbr.rel (%p118) target = $region16
    $region15: #{_adagae_forward_stacked.8} parent=5 // pred_region
      // Predicated region
      $region17: #{_adagae_forward_stacked.8} parent=15 // pred_check
        %p121 = pneg %p42
      $region18: #{_adagae_forward_stacked.8} parent=15 // pred_check_branch
        %123 = sbr.rel (%p121) target = $region20
      $region19: #{_adagae_forward_stacked.8} parent=15 // pred_region
        %s124 = smul.u32 16, %s16
        %p125 = scmp.lt.s32.totalorder %s15, 1
        %s126 = scalar_select %p125, %s15, 1
        %p127 = scmp.lt.s32.totalorder %s124, 15
        %s128 = scalar_select %p127, %s124, 15
        %s129 = smul.addr %s126, 16
        %s130 = sadd.s32 %s128, %s129
        %s131 = smul.addr %s130, 4
        %s132 = scalar_lea.vmem %s0, %s131
        %s133 = smul.u32 16, %s16
      $region20: #{_adagae_forward_stacked.8} parent=15 // pred_fallthru
        _
      // Predicated region
      $region21: #{_adagae_forward_stacked.8} parent=15 // pred_check
        %p134 = pneg %p68
      $region22: #{_adagae_forward_stacked.8} parent=15 // pred_check_branch
        %136 = sbr.rel (%p134) target = $region24
      $region23: #{_adagae_forward_stacked.8} parent=15 // pred_region
        %p137 = scmp.lt.s32.totalorder %s15, 1
        %s138 = scalar_select %p137, %s15, 1
        %s139 = smul.addr %s138, 16
        %s140 = smul.addr %s139, 4
        %s141 = scalar_lea.vmem %s1, %s140
      $region24: #{_adagae_forward_stacked.8} parent=15 // pred_fallthru
        _
    $region16: #{_adagae_forward_stacked.8} parent=5 // pred_fallthru
      _
    %p142 = scmp.le.s32.totalorder 1, %s8
    %p143 = scmp.lt.s32.totalorder %s8, 3
    %p144 = pnand %p142, %p143
    %p145 = pneg %p144
    // Predicated region
    $region25: #{_adagae_forward_stacked.8} parent=5 // pred_check
      _
    $region26: #{_adagae_forward_stacked.8} parent=5 // pred_check_branch
      %147 = sbr.rel (%p144) target = $region28
    $region27: #{_adagae_forward_stacked.8} parent=5 // pred_region
      %s148 = ssub.s32 %s8, 1
      %s149 = smul.u32 16, %s18
      %p150 = scmp.lt.s32.totalorder %s17, 1
      %s151 = scalar_select %p150, %s17, 1
      %p152 = scmp.lt.s32.totalorder %s149, 15
      %s153 = scalar_select %p152, %s149, 15
      %s154 = smul.addr %s151, 16
      %s155 = sadd.s32 %s153, %s154
      %s156 = smul.addr %s155, 4
      %s157 = scalar_lea.vmem %s0, %s156
      %p158 = pneg %p48
      %p159 = pneg %p45
      %p160 = scmp.lt.s32.totalorder %s17, 1
      %s161 = scalar_select %p160, %s17, 1
      %s162 = smul.addr %s161, 16
      %s163 = smul.addr %s162, 4
      %s164 = scalar_lea.vmem %s1, %s163
      %p165 = pneg %p74
      %p166 = pneg %p71
      %p167 = pneg %p102
      %p168 = pneg %p99
      %s169 = smul.u32 16, %s18
      %p170 = scmp.lt.s32.totalorder %s17, 1
      %s171 = scalar_select %p170, %s17, 1
      %p172 = scmp.lt.s32.totalorder %s169, 15
      %s173 = scalar_select %p172, %s169, 15
      %s174 = smul.addr %s171, 16
      %s175 = sadd.s32 %s173, %s174
      %s176 = smul.addr %s175, 8
      %s177 = scalar_lea.vmem %s2, %s176
      %s178 = smul.u32 16, %s18
      %p179 = scmp.lt.s32.totalorder %s17, 1
      %s180 = scalar_select %p179, %s17, 1
      %p181 = scmp.lt.s32.totalorder %s178, 15
      %s182 = scalar_select %p181, %s178, 15
      %s183 = smul.addr %s180, 16
      %s184 = sadd.s32 %s182, %s183
      %s185 = smul.addr %s184, 4
      %s186 = scalar_lea.vmem %s0, %s185
      %s187 = smul.u32 16, %s18
      %p188 = scmp.lt.s32.totalorder %s17, 1
      %s189 = scalar_select %p188, %s17, 1
      %s190 = smul.addr %s189, 16
      %s191 = smul.addr %s190, 4
      %s192 = scalar_lea.vmem %s1, %s191
      %s193 = smul.u32 16, %s18
      %p194 = scmp.lt.s32.totalorder %s17, 1
      %s195 = scalar_select %p194, %s17, 1
      %p196 = scmp.lt.s32.totalorder %s193, 15
      %s197 = scalar_select %p196, %s193, 15
      %s198 = smul.addr %s195, 16
      %s199 = sadd.s32 %s197, %s198
      %s200 = smul.addr %s199, 8
      %s201 = scalar_lea.vmem %s2, %s200
      %s202 = smul.u32 16, %s18
      %v204 = vld [vmem:[%s186] sm:$0xf]
      %v205 = vld [vmem:[%s186 + $0x4] sm:$0xf]
      %v206 = vld [vmem:[%s186 + $0x8] sm:$0xf]
      %v207 = vld [vmem:[%s186 + $0xc] sm:$0xf]
      %v208 = vld [vmem:[%s186 + $0x10] sm:$0xf]
      %v209 = vld [vmem:[%s186 + $0x14] sm:$0xf]
      %v210 = vld [vmem:[%s186 + $0x18] sm:$0xf]
      %v211 = vld [vmem:[%s186 + $0x1c] sm:$0xf]
      %v212 = vld [vmem:[%s186 + $0x20] sm:$0xf]
      %v213 = vld [vmem:[%s186 + $0x24] sm:$0xf]
      %v214 = vld [vmem:[%s186 + $0x28] sm:$0xf]
      %v215 = vld [vmem:[%s186 + $0x2c] sm:$0xf]
      %v216 = vld [vmem:[%s186 + $0x30] sm:$0xf]
      %v217 = vld [vmem:[%s186 + $0x34] sm:$0xf]
      %v218 = vld [vmem:[%s186 + $0x38] sm:$0xf]
      %v219 = vld [vmem:[%s186 + $0x3c] sm:$0xf]
      %v220 = vld [vmem:[%s192] sm:$0xf]
      %v221 = vld [vmem:[%s192 + $0x4] sm:$0xf]
      %v222 = vld [vmem:[%s192 + $0x8] sm:$0xf]
      %v223 = vld [vmem:[%s192 + $0xc] sm:$0xf]
      %v224 = vld [vmem:[%s192 + $0x10] sm:$0xf]
      %v225 = vld [vmem:[%s192 + $0x14] sm:$0xf]
      %v226 = vld [vmem:[%s192 + $0x18] sm:$0xf]
      %v227 = vld [vmem:[%s192 + $0x1c] sm:$0xf]
      %v228 = vld [vmem:[%s192 + $0x20] sm:$0xf]
      %v229 = vld [vmem:[%s192 + $0x24] sm:$0xf]
      %v230 = vld [vmem:[%s192 + $0x28] sm:$0xf]
      %v231 = vld [vmem:[%s192 + $0x2c] sm:$0xf]
      %v232 = vld [vmem:[%s192 + $0x30] sm:$0xf]
      %v233 = vld [vmem:[%s192 + $0x34] sm:$0xf]
      %v234 = vld [vmem:[%s192 + $0x38] sm:$0xf]
      %v235 = vld [vmem:[%s192 + $0x3c] sm:$0xf]
      %v252 = vunpack.c.l.b16 %v204
      %v253 = vunpack.c.l.b16 %v205
      %v254 = vunpack.c.l.b16 %v206
      %v255 = vunpack.c.l.b16 %v207
      %v256 = vunpack.c.l.b16 %v208
      %v257 = vunpack.c.l.b16 %v209
      %v258 = vunpack.c.l.b16 %v210
      %v259 = vunpack.c.l.b16 %v211
      %v260 = vunpack.c.l.b16 %v212
      %v261 = vunpack.c.l.b16 %v213
      %v262 = vunpack.c.l.b16 %v214
      %v263 = vunpack.c.l.b16 %v215
      %v264 = vunpack.c.l.b16 %v216
      %v265 = vunpack.c.l.b16 %v217
      %v266 = vunpack.c.l.b16 %v218
      %v267 = vunpack.c.l.b16 %v219
      %v268 = vpack.c.b16 %v253, %v252
      %v269 = vpack.c.b16 %v255, %v254
      %v270 = vpack.c.b16 %v257, %v256
      %v271 = vpack.c.b16 %v259, %v258
      %v272 = vpack.c.b16 %v261, %v260
      %v273 = vpack.c.b16 %v263, %v262
      %v274 = vpack.c.b16 %v265, %v264
      %v275 = vpack.c.b16 %v267, %v266
      %v300 = vunpack.c.l.b16 %v220
      %v301 = vunpack.c.l.b16 %v221
      %v302 = vunpack.c.l.b16 %v222
      %v303 = vunpack.c.l.b16 %v223
      %v304 = vunpack.c.l.b16 %v224
      %v305 = vunpack.c.l.b16 %v225
      %v306 = vunpack.c.l.b16 %v226
      %v307 = vunpack.c.l.b16 %v227
      %v308 = vunpack.c.l.b16 %v228
      %v309 = vunpack.c.l.b16 %v229
      %v310 = vunpack.c.l.b16 %v230
      %v311 = vunpack.c.l.b16 %v231
      %v312 = vunpack.c.l.b16 %v232
      %v313 = vunpack.c.l.b16 %v233
      %v314 = vunpack.c.l.b16 %v234
      %v315 = vunpack.c.l.b16 %v235
      %v316 = vpack.c.b16 %v301, %v300
      %v317 = vpack.c.b16 %v303, %v302
      %v318 = vpack.c.b16 %v305, %v304
      %v319 = vpack.c.b16 %v307, %v306
      %v320 = vpack.c.b16 %v309, %v308
      %v321 = vpack.c.b16 %v311, %v310
      %v322 = vpack.c.b16 %v313, %v312
      %v323 = vpack.c.b16 %v315, %v314
      %332 = vmatprep.subr.bf16.mxu0 0
      %333 = vmatpush1.bf16.msra.mxu0 %v316
      %334 = vmatprep.subr.bf16.mxu0 0
      %335 = vmatpush1.bf16.msra.mxu0 %v317
      %336 = vmatprep.subr.bf16.mxu0 0
      %337 = vmatpush1.bf16.msra.mxu0 %v318
      %338 = vmatprep.subr.bf16.mxu0 0
      %339 = vmatpush1.bf16.msra.mxu0 %v319
      %340 = vmatprep.subr.bf16.mxu0 0
      %341 = vmatpush1.bf16.msra.mxu0 %v320
      %342 = vmatprep.subr.bf16.mxu0 0
      %343 = vmatpush1.bf16.msra.mxu0 %v321
      %344 = vmatprep.subr.bf16.mxu0 0
      %345 = vmatpush1.bf16.msra.mxu0 %v322
      %346 = vmatprep.subr.bf16.mxu0 0
      %347 = vmatpush1.bf16.msra.mxu0 %v323
      %348 = vmatprep.subr.bf16.mxu0 0
      %349 = vmatpush1.bf16.msra.mxu0 0
      %350 = vmatprep.subr.bf16.mxu0 0
      %351 = vmatpush1.bf16.msra.mxu0 0
      %352 = vmatprep.subr.bf16.mxu0 0
      %353 = vmatpush1.bf16.msra.mxu0 0
      %354 = vmatprep.subr.bf16.mxu0 0
      %355 = vmatpush1.bf16.msra.mxu0 0
      %356 = vmatprep.subr.bf16.mxu0 0
      %357 = vmatpush1.bf16.msra.mxu0 0
      %358 = vmatprep.subr.bf16.mxu0 0
      %359 = vmatpush1.bf16.msra.mxu0 0
      %360 = vmatprep.subr.bf16.mxu0 0
      %361 = vmatpush1.bf16.msra.mxu0 0
      %362 = vmatprep.subr.bf16.mxu0 0
      %363 = vmatpush1.bf16.msra.mxu0 0
      %364 = vmatprep.mubr.bf16.mxu0 0
      %365 = vmatmul.mubr.bf16.gmra.mrb[0].mxu0 %v268
      %v366 = vpop.f32.mrb[0].mxu0
      %v367 = vadd.f32 0.0, %v366
      %v368 = vpop.f32.mrb[0].mxu0
      %v369 = vpop.f32.mrb[0].mxu0
      %v370 = vadd.f32 0.0, %v369
      %v371 = vpop.f32.mrb[0].mxu0
      %372 = vmatprep.mubr.bf16.mxu0 0
      %373 = vmatmul.mubr.bf16.gmra.mrb[0].mxu0 %v269
      %v374 = vpop.f32.mrb[0].mxu0
      %v375 = vadd.f32 0.0, %v374
      %v376 = vpop.f32.mrb[0].mxu0
      %v377 = vpop.f32.mrb[0].mxu0
      %v378 = vadd.f32 0.0, %v377
      %v379 = vpop.f32.mrb[0].mxu0
      %380 = vmatprep.mubr.bf16.mxu0 0
      %381 = vmatmul.mubr.bf16.gmra.mrb[0].mxu0 %v270
      %v382 = vpop.f32.mrb[0].mxu0
      %v383 = vadd.f32 0.0, %v382
      %v384 = vpop.f32.mrb[0].mxu0
      %v385 = vpop.f32.mrb[0].mxu0
      %v386 = vadd.f32 0.0, %v385
      %v387 = vpop.f32.mrb[0].mxu0
      %388 = vmatprep.mubr.bf16.mxu0 0
      %389 = vmatmul.mubr.bf16.gmra.mrb[0].mxu0 %v271
      %v390 = vpop.f32.mrb[0].mxu0
      %v391 = vadd.f32 0.0, %v390
      %v392 = vpop.f32.mrb[0].mxu0
      %v393 = vpop.f32.mrb[0].mxu0
      %v394 = vadd.f32 0.0, %v393
      %v395 = vpop.f32.mrb[0].mxu0
      %396 = vmatprep.mubr.bf16.mxu0 0
      %397 = vmatmul.mubr.bf16.gmra.mrb[0].mxu0 %v272
      %v398 = vpop.f32.mrb[0].mxu0
      %v399 = vadd.f32 0.0, %v398
      %v400 = vpop.f32.mrb[0].mxu0
      %v401 = vpop.f32.mrb[0].mxu0
      %v402 = vadd.f32 0.0, %v401
      %v403 = vpop.f32.mrb[0].mxu0
      %404 = vmatprep.mubr.bf16.mxu0 0
      %405 = vmatmul.mubr.bf16.gmra.mrb[0].mxu0 %v273
      %v406 = vpop.f32.mrb[0].mxu0
      %v407 = vadd.f32 0.0, %v406
      %v408 = vpop.f32.mrb[0].mxu0
      %v409 = vpop.f32.mrb[0].mxu0
      %v410 = vadd.f32 0.0, %v409
      %v411 = vpop.f32.mrb[0].mxu0
      %412 = vmatprep.mubr.bf16.mxu0 0
      %413 = vmatmul.mubr.bf16.gmra.mrb[0].mxu0 %v274
      %v414 = vpop.f32.mrb[0].mxu0
      %v415 = vadd.f32 0.0, %v414
      %v416 = vpop.f32.mrb[0].mxu0
      %v417 = vpop.f32.mrb[0].mxu0
      %v418 = vadd.f32 0.0, %v417
      %v419 = vpop.f32.mrb[0].mxu0
      %420 = vmatprep.mubr.bf16.mxu0 0
      %421 = vmatmul.mubr.bf16.gmra.mrb[0].mxu0 %v275
      %v422 = vpop.f32.mrb[0].mxu0
      %v423 = vadd.f32 0.0, %v422
      %v424 = vpop.f32.mrb[0].mxu0
      %v425 = vpop.f32.mrb[0].mxu0
      %v426 = vadd.f32 0.0, %v425
      %v427 = vpop.f32.mrb[0].mxu0
      %428 = vdwg.mxu0
      %429 = vst [vmem:[%s201] sm:$0xff] %v367
      %430 = vst [vmem:[%s201 + $0x8] sm:$0xff] %v370
      %431 = vst [vmem:[%s201 + $0x10] sm:$0xff] %v375
      %432 = vst [vmem:[%s201 + $0x18] sm:$0xff] %v378
      %433 = vst [vmem:[%s201 + $0x20] sm:$0xff] %v383
      %434 = vst [vmem:[%s201 + $0x28] sm:$0xff] %v386
      %435 = vst [vmem:[%s201 + $0x30] sm:$0xff] %v391
      %436 = vst [vmem:[%s201 + $0x38] sm:$0xff] %v394
      %437 = vst [vmem:[%s201 + $0x40] sm:$0xff] %v399
      %438 = vst [vmem:[%s201 + $0x48] sm:$0xff] %v402
      %439 = vst [vmem:[%s201 + $0x50] sm:$0xff] %v407
      %440 = vst [vmem:[%s201 + $0x58] sm:$0xff] %v410
      %441 = vst [vmem:[%s201 + $0x60] sm:$0xff] %v415
      %442 = vst [vmem:[%s201 + $0x68] sm:$0xff] %v418
      %443 = vst [vmem:[%s201 + $0x70] sm:$0xff] %v423
      %444 = vst [vmem:[%s201 + $0x78] sm:$0xff] %v426
      %s445 = smul.u32 16, %s18
      %p446 = scmp.lt.s32.totalorder %s17, 1
      %s447 = scalar_select %p446, %s17, 1
      %p448 = scmp.lt.s32.totalorder %s445, 15
      %s449 = scalar_select %p448, %s445, 15
      %s450 = smul.addr %s447, 16
      %s451 = sadd.s32 %s449, %s450
      %s452 = smul.addr %s451, 8
      %s453 = scalar_lea.vmem %s2, %s452
      // Predicated region
      $region29: #{_adagae_forward_stacked.8} parent=27 // pred_check
        %p454 = pneg %p99
      $region30: #{_adagae_forward_stacked.8} parent=27 // pred_check_branch
        %456 = sbr.rel (%p454) target = $region32
      $region31: #{_adagae_forward_stacked.8} parent=27 // pred_region
        %s457 = smul.u32 16, %s18
      $region32: #{_adagae_forward_stacked.8} parent=27 // pred_fallthru
        _
    $region28: #{_adagae_forward_stacked.8} parent=5 // pred_fallthru
      _
    %p458 = scmp.le.s32.totalorder 2, %s8
    // Predicated region
    $region33: #{_adagae_forward_stacked.8} parent=5 // pred_check
      %p459 = pneg %p458
    $region34: #{_adagae_forward_stacked.8} parent=5 // pred_check_branch
      %461 = sbr.rel (%p459) target = $region36
    $region35: #{_adagae_forward_stacked.8} parent=5 // pred_region
      %s462 = ssub.s32 %s8, 2
      // Predicated region
      $region37: #{_adagae_forward_stacked.8} parent=35 // pred_check
        %p463 = pneg %p105
      $region38: #{_adagae_forward_stacked.8} parent=35 // pred_check_branch
        %465 = sbr.rel (%p463) target = $region40
      $region39: #{_adagae_forward_stacked.8} parent=35 // pred_region
        %s466 = smul.u32 16, %s20
        %p467 = scmp.lt.s32.totalorder %s19, 1
        %s468 = scalar_select %p467, %s19, 1
        %p469 = scmp.lt.s32.totalorder %s466, 15
        %s470 = scalar_select %p469, %s466, 15
        %s471 = smul.addr %s468, 16
        %s472 = sadd.s32 %s470, %s471
        %s473 = smul.addr %s472, 8
        %s474 = scalar_lea.vmem %s2, %s473
      $region40: #{_adagae_forward_stacked.8} parent=35 // pred_fallthru
        _
    $region36: #{_adagae_forward_stacked.8} parent=5 // pred_fallthru
      _
  $region6: #{_adagae_forward_stacked.8} parent=0 // loop_footer
    %s12 = sadd.s32 1, %s8
  $region7: #{_adagae_forward_stacked.8} parent=0 // loop_footer_branch
    %7 = sbr.rel target = $region3
  $region8: #{_adagae_forward_stacked.8} parent=0 // loop_exit
    _

// kernel: _adagae_forward_stacked.9
$region0: #{_adagae_forward_stacked.9}
  #allocation0 [shape = 'u32[]', space=smem, size = 0x4, offset = 0x4, fixed_abs, tag = 'smem constant byte address 0x4 - core index']
  #allocation1 [shape = 'u32[144,128]{1,0:T(1,128)}', space=vmem, size = 0x12000, scoped, tag = 'internal scratch']
  %s0 = inlined_call_operand.vmem [shape: f32[2,128,128], index: 0, kind: input, shape index: {}]
  %s1 = inlined_call_operand.vmem [shape: bf16[2,128,128], index: 1, kind: input, shape index: {}]
  %s2 = inlined_call_operand.vmem [shape: f32[2,1,128], index: 2, kind: input, shape index: {}]
  %s3 = inlined_call_operand.hbm [shape: f32[2,128,128], index: 3, kind: output, shape index: {}]
  %s4 = sld [smem:[#allocation0]]
  $region45: #{_adagae_forward_stacked.9} parent=0
    _
  %s6 = ssub.s32 1, %s4
  %s7 = scalar_select 0, %s6, %s4
  $region1: #{_adagae_forward_stacked.9} parent=0
    #allocation2 [shape = 'u8[131072]{0}', space=vmem, size = 0x20000, scoped, tag = 'output window, operand 0']
    #allocation3 [shape = 's32[2]{0}', space=sflag, size = 0x8, scoped, tag = 'scoped memory for _adagae_forward_stacked.9']
    %8 = vsyncpa [#allocation3], 0
    %s9 = scalar_lea.sflag [#allocation3], 1
    %10 = vsyncpa %s9, 0
    loop: start=0, step=1, limit=4
    $region2: #{_adagae_forward_stacked.9} parent=1 // loop_pre_header
      _
    $region3: #{_adagae_forward_stacked.9} parent=1 // loop_header
      %s12 = sphi 0, %s16
      %p13 = scmp.ge.s32.totalorder %s12, 4
      %s19 = sphi 0, %s31
      %s20 = sphi 0, %s27
      %s21 = sphi 0, %s19
      %s22 = sphi 0, %s20
      %s23 = sphi 0, %s21
      %s24 = sphi 0, %s22
      %s36 = sphi 0, %s38
      %s39 = sphi 0, %s36
      %s40 = sphi 0, %s39
      %s56 = sphi 0, %s40
      %s62 = sphi 0, %s64
      %s65 = sphi 0, %s62
      %s66 = sphi 0, %s65
      %s82 = sphi 0, %s66
      %s88 = sphi 0, %s90
      %s91 = sphi 0, %s88
      %s92 = sphi 0, %s91
      %s108 = sphi 0, %s92
      %s116 = sphi 0, %s118
      %s119 = sphi 0, %s116
      %s120 = sphi 0, %s119
      %s136 = sphi 0, %s120
    $region4: #{_adagae_forward_stacked.9} parent=1 // loop_header_branch
      %15 = sbr.rel (%p13) target = $region8
    $region5: #{_adagae_forward_stacked.9} parent=1 // loop_body
      %s17 = ssub.s32 %s12, 1
      %s18 = ssub.s32 %s12, 2
      %s25 = sadd.s32 1, %s20
      %p26 = scmp.ge.s32.totalorder %s25, 1
      %s27 = scalar_select %p26, 0, %s25
      %s28 = sadd.s32 1, %s19
      %s29 = scalar_select %p26, %s28, %s19
      %p30 = scmp.ge.s32.totalorder %s29, 2
      %s31 = scalar_select %p30, 0, %s29
      %s32 = ssub.s32 %s19, %s31
      %s33 = ssub.s32 %s20, %s27
      %s34 = sor.u32 %s32, %s33
      %p35 = scmp.eq.s32.totalorder %s34, 0
      %s37 = sadd.s32 %s36, 1
      %s38 = scalar_select %p35, %s36, %s37
      %p41 = pneg %p35
      %p42 = scmp.eq.s32.totalorder %s12, 1
      %p43 = por %p41, %p42
      %p44 = scmp.ne.s32.totalorder %s36, %s39
      %p45 = scmp.eq.s32.totalorder %s12, 0
      %p46 = por %p44, %p45
      %p47 = scmp.ne.s32.totalorder %s36, %s39
      %p48 = scmp.eq.s32.totalorder %s17, 1
      %p49 = por %p47, %p48
      %p50 = scmp.ne.s32.totalorder %s39, %s40
      %p51 = scmp.eq.s32.totalorder %s17, 0
      %p52 = por %p50, %p51
      %p53 = scmp.ne.s32.totalorder %s39, %s40
      %p54 = scmp.eq.s32.totalorder %s18, 1
      %p55 = por %p53, %p54
      %p57 = scmp.ne.s32.totalorder %s40, %s56
      %p58 = scmp.eq.s32.totalorder %s18, 0
      %p59 = por %p57, %p58
      %s60 = ssub.s32 %s19, %s31
      %p61 = scmp.eq.s32.totalorder %s60, 0
      %s63 = sadd.s32 %s62, 1
      %s64 = scalar_select %p61, %s62, %s63
      %p67 = pneg %p61
      %p68 = scmp.eq.s32.totalorder %s12, 1
      %p69 = por %p67, %p68
      %p70 = scmp.ne.s32.totalorder %s62, %s65
      %p71 = scmp.eq.s32.totalorder %s12, 0
      %p72 = por %p70, %p71
      %p73 = scmp.ne.s32.totalorder %s62, %s65
      %p74 = scmp.eq.s32.totalorder %s17, 1
      %p75 = por %p73, %p74
      %p76 = scmp.ne.s32.totalorder %s65, %s66
      %p77 = scmp.eq.s32.totalorder %s17, 0
      %p78 = por %p76, %p77
      %p79 = scmp.ne.s32.totalorder %s65, %s66
      %p80 = scmp.eq.s32.totalorder %s18, 1
      %p81 = por %p79, %p80
      %p83 = scmp.ne.s32.totalorder %s66, %s82
      %p84 = scmp.eq.s32.totalorder %s18, 0
      %p85 = por %p83, %p84
      %s86 = ssub.s32 %s19, %s31
      %p87 = scmp.eq.s32.totalorder %s86, 0
      %s89 = sadd.s32 %s88, 1
      %s90 = scalar_select %p87, %s88, %s89
      %p93 = pneg %p87
      %p94 = scmp.eq.s32.totalorder %s12, 1
      %p95 = por %p93, %p94
      %p96 = scmp.ne.s32.totalorder %s88, %s91
      %p97 = scmp.eq.s32.totalorder %s12, 0
      %p98 = por %p96, %p97
      %p99 = scmp.ne.s32.totalorder %s88, %s91
      %p100 = scmp.eq.s32.totalorder %s17, 1
      %p101 = por %p99, %p100
      %p102 = scmp.ne.s32.totalorder %s91, %s92
      %p103 = scmp.eq.s32.totalorder %s17, 0
      %p104 = por %p102, %p103
      %p105 = scmp.ne.s32.totalorder %s91, %s92
      %p106 = scmp.eq.s32.totalorder %s18, 1
      %p107 = por %p105, %p106
      %p109 = scmp.ne.s32.totalorder %s92, %s108
      %p110 = scmp.eq.s32.totalorder %s18, 0
      %p111 = por %p109, %p110
      %s112 = ssub.s32 %s19, %s31
      %s113 = ssub.s32 %s20, %s27
      %s114 = sor.u32 %s112, %s113
      %p115 = scmp.eq.s32.totalorder %s114, 0
      %s117 = sadd.s32 %s116, 1
      %s118 = scalar_select %p115, %s116, %s117
      %p121 = pneg %p115
      %p122 = scmp.eq.s32.totalorder %s12, 1
      %p123 = por %p121, %p122
      %p124 = scmp.ne.s32.totalorder %s116, %s119
      %p125 = scmp.eq.s32.totalorder %s12, 0
      %p126 = por %p124, %p125
      %p127 = scmp.ne.s32.totalorder %s116, %s119
      %p128 = scmp.eq.s32.totalorder %s17, 1
      %p129 = por %p127, %p128
      %p130 = scmp.ne.s32.totalorder %s119, %s120
      %p131 = scmp.eq.s32.totalorder %s17, 0
      %p132 = por %p130, %p131
      %p133 = scmp.ne.s32.totalorder %s119, %s120
      %p134 = scmp.eq.s32.totalorder %s18, 1
      %p135 = por %p133, %p134
      %p137 = scmp.ne.s32.totalorder %s120, %s136
      %p138 = scmp.eq.s32.totalorder %s18, 0
      %p139 = por %p137, %p138
      %p140 = scmp.le.s32.totalorder 1, %s12
      %p141 = scmp.lt.s32.totalorder %s12, 3
      %p142 = pnand %p140, %p141
      %p143 = pneg %p142
      // Predicated region
      $region9: #{_adagae_forward_stacked.9} parent=5 // pred_check
        _
      $region10: #{_adagae_forward_stacked.9} parent=5 // pred_check_branch
        %145 = sbr.rel (%p142) target = $region12
      $region11: #{_adagae_forward_stacked.9} parent=5 // pred_region
        %s146 = ssub.s32 %s12, 1
      $region12: #{_adagae_forward_stacked.9} parent=5 // pred_fallthru
        _
      %p147 = scmp.lt.s32.totalorder %s12, 2
      // Predicated region
      $region13: #{_adagae_forward_stacked.9} parent=5 // pred_check
        %p148 = pneg %p147
      $region14: #{_adagae_forward_stacked.9} parent=5 // pred_check_branch
        %150 = sbr.rel (%p148) target = $region16
      $region15: #{_adagae_forward_stacked.9} parent=5 // pred_region
        // Predicated region
        $region17: #{_adagae_forward_stacked.9} parent=15 // pred_check
          %p151 = pneg %p46
        $region18: #{_adagae_forward_stacked.9} parent=15 // pred_check_branch
          %153 = sbr.rel (%p151) target = $region20
        $region19: #{_adagae_forward_stacked.9} parent=15 // pred_region
          %s154 = smul.u32 16, %s20
          %p155 = scmp.lt.s32.totalorder %s19, 1
          %s156 = scalar_select %p155, %s19, 1
          %p157 = scmp.lt.s32.totalorder %s154, 15
          %s158 = scalar_select %p157, %s154, 15
          %s159 = smul.addr %s156, 16
          %s160 = sadd.s32 %s158, %s159
          %s161 = smul.addr %s160, 8
          %s162 = scalar_lea.vmem %s0, %s161
          %s163 = smul.u32 16, %s20
        $region20: #{_adagae_forward_stacked.9} parent=15 // pred_fallthru
          _
        // Predicated region
        $region21: #{_adagae_forward_stacked.9} parent=15 // pred_check
          %p164 = pneg %p72
        $region22: #{_adagae_forward_stacked.9} parent=15 // pred_check_branch
          %166 = sbr.rel (%p164) target = $region24
        $region23: #{_adagae_forward_stacked.9} parent=15 // pred_region
          %p167 = scmp.lt.s32.totalorder %s19, 1
          %s168 = scalar_select %p167, %s19, 1
          %s169 = smul.addr %s168, 16
          %s170 = smul.addr %s169, 4
          %s171 = scalar_lea.vmem %s1, %s170
        $region24: #{_adagae_forward_stacked.9} parent=15 // pred_fallthru
          _
        // Predicated region
        $region25: #{_adagae_forward_stacked.9} parent=15 // pred_check
          %p172 = pneg %p98
        $region26: #{_adagae_forward_stacked.9} parent=15 // pred_check_branch
          %174 = sbr.rel (%p172) target = $region28
        $region27: #{_adagae_forward_stacked.9} parent=15 // pred_region
          %p175 = scmp.lt.s32.totalorder %s19, 1
          %s176 = scalar_select %p175, %s19, 1
          %s177 = scalar_lea.vmem %s2, %s176
        $region28: #{_adagae_forward_stacked.9} parent=15 // pred_fallthru
          _
      $region16: #{_adagae_forward_stacked.9} parent=5 // pred_fallthru
        _
      %p178 = scmp.le.s32.totalorder 1, %s12
      %p179 = scmp.lt.s32.totalorder %s12, 3
      %p180 = pnand %p178, %p179
      %p181 = pneg %p180
      // Predicated region
      $region29: #{_adagae_forward_stacked.9} parent=5 // pred_check
        _
      $region30: #{_adagae_forward_stacked.9} parent=5 // pred_check_branch
        %183 = sbr.rel (%p180) target = $region32
      $region31: #{_adagae_forward_stacked.9} parent=5 // pred_region
        %s184 = ssub.s32 %s12, 1
        %s185 = smul.u32 16, %s22
        %p186 = scmp.lt.s32.totalorder %s21, 1
        %s187 = scalar_select %p186, %s21, 1
        %p188 = scmp.lt.s32.totalorder %s185, 15
        %s189 = scalar_select %p188, %s185, 15
        %s190 = smul.addr %s187, 16
        %s191 = sadd.s32 %s189, %s190
        %s192 = smul.addr %s191, 8
        %s193 = scalar_lea.vmem %s0, %s192
        %p194 = pneg %p52
        %p195 = pneg %p49
        %p196 = scmp.lt.s32.totalorder %s21, 1
        %s197 = scalar_select %p196, %s21, 1
        %s198 = smul.addr %s197, 16
        %s199 = smul.addr %s198, 4
        %s200 = scalar_lea.vmem %s1, %s199
        %p201 = pneg %p78
        %p202 = pneg %p75
        %p203 = scmp.lt.s32.totalorder %s21, 1
        %s204 = scalar_select %p203, %s21, 1
        %s205 = scalar_lea.vmem %s2, %s204
        %p206 = pneg %p104
        %p207 = pneg %p101
        %p208 = pneg %p132
        %p209 = pneg %p129
        %s210 = sand.u32 %s119, 1
        %s211 = scalar_lea.sflag [#allocation3], %s210
        %s212 = sand.u32 %s119, 1
        %s213 = smul.addr %s212, 128
        %s214 = scalar_lea.vmem [#allocation2], %s213
        %s215 = smul.u32 16, %s22
        %p216 = scmp.lt.s32.totalorder %s21, 1
        %s217 = scalar_select %p216, %s21, 1
        %p218 = scmp.lt.s32.totalorder %s215, 15
        %s219 = scalar_select %p218, %s215, 15
        %s220 = smul.addr %s217, 16
        %s221 = sadd.s32 %s219, %s220
        %s222 = smul.addr %s221, 8
        %s223 = scalar_lea.vmem %s0, %s222
        %s224 = smul.u32 16, %s22
        %p225 = scmp.lt.s32.totalorder %s21, 1
        %s226 = scalar_select %p225, %s21, 1
        %s227 = smul.addr %s226, 16
        %s228 = smul.addr %s227, 4
        %s229 = scalar_lea.vmem %s1, %s228
        %p230 = scmp.lt.s32.totalorder %s21, 1
        %s231 = scalar_select %p230, %s21, 1
        %s232 = scalar_lea.vmem %s2, %s231
        %s233 = smul.u32 16, %s22
        %v235 = vld [vmem:[%s223] sm:$0xff]
        %v236 = vld [vmem:[%s223 + $0x8] sm:$0xff]
        %v237 = vld [vmem:[%s223 + $0x10] sm:$0xff]
        %v238 = vld [vmem:[%s223 + $0x18] sm:$0xff]
        %v239 = vld [vmem:[%s223 + $0x20] sm:$0xff]
        %v240 = vld [vmem:[%s223 + $0x28] sm:$0xff]
        %v241 = vld [vmem:[%s223 + $0x30] sm:$0xff]
        %v242 = vld [vmem:[%s223 + $0x38] sm:$0xff]
        %v243 = vld [vmem:[%s223 + $0x40] sm:$0xff]
        %v244 = vld [vmem:[%s223 + $0x48] sm:$0xff]
        %v245 = vld [vmem:[%s223 + $0x50] sm:$0xff]
        %v246 = vld [vmem:[%s223 + $0x58] sm:$0xff]
        %v247 = vld [vmem:[%s223 + $0x60] sm:$0xff]
        %v248 = vld [vmem:[%s223 + $0x68] sm:$0xff]
        %v249 = vld [vmem:[%s223 + $0x70] sm:$0xff]
        %v250 = vld [vmem:[%s223 + $0x78] sm:$0xff]
        %v251 = vmul.f32 %v235, %v235
        %v252 = vmul.f32 %v236, %v236
        %v253 = vmul.f32 %v237, %v237
        %v254 = vmul.f32 %v238, %v238
        %v255 = vmul.f32 %v239, %v239
        %v256 = vmul.f32 %v240, %v240
        %v257 = vmul.f32 %v241, %v241
        %v258 = vmul.f32 %v242, %v242
        %v259 = vmul.f32 %v243, %v243
        %v260 = vmul.f32 %v244, %v244
        %v261 = vmul.f32 %v245, %v245
        %v262 = vmul.f32 %v246, %v246
        %v263 = vmul.f32 %v247, %v247
        %v264 = vmul.f32 %v248, %v248
        %v265 = vmul.f32 %v249, %v249
        %v266 = vmul.f32 %v250, %v250
        %267 = vadd.xlane.f32.xlu0 %v251
        %v268 = vpop.xlane.xlu0 %267
        %269 = vadd.xlane.f32.xlu0 %v252
        %v270 = vpop.xlane.xlu0 %269
        %271 = vadd.xlane.f32.xlu0 %v253
        %v272 = vpop.xlane.xlu0 %271
        %273 = vadd.xlane.f32.xlu0 %v254
        %v274 = vpop.xlane.xlu0 %273
        %275 = vadd.xlane.f32.xlu0 %v255
        %v276 = vpop.xlane.xlu0 %275
        %277 = vadd.xlane.f32.xlu0 %v256
        %v278 = vpop.xlane.xlu0 %277
        %279 = vadd.xlane.f32.xlu0 %v257
        %v280 = vpop.xlane.xlu0 %279
        %281 = vadd.xlane.f32.xlu0 %v258
        %v282 = vpop.xlane.xlu0 %281
        %283 = vadd.xlane.f32.xlu0 %v259
        %v284 = vpop.xlane.xlu0 %283
        %285 = vadd.xlane.f32.xlu0 %v260
        %v286 = vpop.xlane.xlu0 %285
        %287 = vadd.xlane.f32.xlu0 %v261
        %v288 = vpop.xlane.xlu0 %287
        %289 = vadd.xlane.f32.xlu0 %v262
        %v290 = vpop.xlane.xlu0 %289
        %291 = vadd.xlane.f32.xlu0 %v263
        %v292 = vpop.xlane.xlu0 %291
        %293 = vadd.xlane.f32.xlu0 %v264
        %v294 = vpop.xlane.xlu0 %293
        %295 = vadd.xlane.f32.xlu0 %v265
        %v296 = vpop.xlane.xlu0 %295
        %297 = vadd.xlane.f32.xlu0 %v266
        %v298 = vpop.xlane.xlu0 %297
        %v299 = vpack.c.bf16 %v236, %v235
        %v300 = vpack.c.bf16 %v238, %v237
        %v301 = vpack.c.bf16 %v240, %v239
        %v302 = vpack.c.bf16 %v242, %v241
        %v303 = vpack.c.bf16 %v244, %v243
        %v304 = vpack.c.bf16 %v246, %v245
        %v305 = vpack.c.bf16 %v248, %v247
        %v306 = vpack.c.bf16 %v250, %v249
        %v307 = vld [vmem:[%s229] sm:$0xf]
        %v308 = vld [vmem:[%s229 + $0x4] sm:$0xf]
        %v309 = vld [vmem:[%s229 + $0x8] sm:$0xf]
        %v310 = vld [vmem:[%s229 + $0xc] sm:$0xf]
        %v311 = vld [vmem:[%s229 + $0x10] sm:$0xf]
        %v312 = vld [vmem:[%s229 + $0x14] sm:$0xf]
        %v313 = vld [vmem:[%s229 + $0x18] sm:$0xf]
        %v314 = vld [vmem:[%s229 + $0x1c] sm:$0xf]
        %v315 = vld [vmem:[%s229 + $0x20] sm:$0xf]
        %v316 = vld [vmem:[%s229 + $0x24] sm:$0xf]
        %v317 = vld [vmem:[%s229 + $0x28] sm:$0xf]
        %v318 = vld [vmem:[%s229 + $0x2c] sm:$0xf]
        %v319 = vld [vmem:[%s229 + $0x30] sm:$0xf]
        %v320 = vld [vmem:[%s229 + $0x34] sm:$0xf]
        %v321 = vld [vmem:[%s229 + $0x38] sm:$0xf]
        %v322 = vld [vmem:[%s229 + $0x3c] sm:$0xf]
        %v339 = vunpack.c.l.b16 %v307
        %v340 = vunpack.c.l.b16 %v308
        %v341 = vunpack.c.l.b16 %v309
        %v342 = vunpack.c.l.b16 %v310
        %v343 = vunpack.c.l.b16 %v311
        %v344 = vunpack.c.l.b16 %v312
        %v345 = vunpack.c.l.b16 %v313
        %v346 = vunpack.c.l.b16 %v314
        %v347 = vunpack.c.l.b16 %v315
        %v348 = vunpack.c.l.b16 %v316
        %v349 = vunpack.c.l.b16 %v317
        %v350 = vunpack.c.l.b16 %v318
        %v351 = vunpack.c.l.b16 %v319
        %v352 = vunpack.c.l.b16 %v320
        %v353 = vunpack.c.l.b16 %v321
        %v354 = vunpack.c.l.b16 %v322
        %v355 = vpack.c.b16 %v340, %v339
        %v356 = vpack.c.b16 %v342, %v341
        %v357 = vpack.c.b16 %v344, %v343
        %v358 = vpack.c.b16 %v346, %v345
        %v359 = vpack.c.b16 %v348, %v347
        %v360 = vpack.c.b16 %v350, %v349
        %v361 = vpack.c.b16 %v352, %v351
        %v362 = vpack.c.b16 %v354, %v353
        %371 = vmatprep.subr.bf16.mxu0 0
        %372 = vmatpush1.bf16.xpose.msra.mxu0 %v355
        %373 = vmatprep.subr.bf16.mxu0 0
        %374 = vmatpush1.bf16.xpose.msra.mxu0 %v356
        %375 = vmatprep.subr.bf16.mxu0 0
        %376 = vmatpush1.bf16.xpose.msra.mxu0 %v357
        %377 = vmatprep.subr.bf16.mxu0 0
        %378 = vmatpush1.bf16.xpose.msra.mxu0 %v358
        %379 = vmatprep.subr.bf16.mxu0 0
        %380 = vmatpush1.bf16.xpose.msra.mxu0 %v359
        %381 = vmatprep.subr.bf16.mxu0 0
        %382 = vmatpush1.bf16.xpose.msra.mxu0 %v360
        %383 = vmatprep.subr.bf16.mxu0 0
        %384 = vmatpush1.bf16.xpose.msra.mxu0 %v361
        %385 = vmatprep.subr.bf16.mxu0 0
        %386 = vmatpush1.bf16.xpose.msra.mxu0 %v362
        %387 = vmatprep.subr.bf16.mxu0 0
        %388 = vmatpush1.bf16.xpose.msra.mxu0 0
        %389 = vmatprep.subr.bf16.mxu0 0
        %390 = vmatpush1.bf16.xpose.msra.mxu0 0
        %391 = vmatprep.subr.bf16.mxu0 0
        %392 = vmatpush1.bf16.xpose.msra.mxu0 0
        %393 = vmatprep.subr.bf16.mxu0 0
        %394 = vmatpush1.bf16.xpose.msra.mxu0 0
        %395 = vmatprep.subr.bf16.mxu0 0
        %396 = vmatpush1.bf16.xpose.msra.mxu0 0
        %397 = vmatprep.subr.bf16.mxu0 0
        %398 = vmatpush1.bf16.xpose.msra.mxu0 0
        %399 = vmatprep.subr.bf16.mxu0 0
        %400 = vmatpush1.bf16.xpose.msra.mxu0 0
        %401 = vmatprep.subr.bf16.mxu0 0
        %402 = vmatpush1.bf16.xpose.msra.mxu0 0
        %403 = vmatprep.mubr.bf16.mxu0 0
        %404 = vmatmul.mubr.bf16.gmra.mrb[0].mxu0 %v299
        %v405 = vpop.f32.mrb[0].mxu0
        %v406 = vadd.f32 0.0, %v405
        %v407 = vpop.f32.mrb[0].mxu0
        %v408 = vpop.f32.mrb[0].mxu0
        %v409 = vadd.f32 0.0, %v408
        %v410 = vpop.f32.mrb[0].mxu0
        %411 = vmatprep.mubr.bf16.mxu0 0
        %412 = vmatmul.mubr.bf16.gmra.mrb[0].mxu0 %v300
        %v413 = vpop.f32.mrb[0].mxu0
        %v414 = vadd.f32 0.0, %v413
        %v415 = vpop.f32.mrb[0].mxu0
        %v416 = vpop.f32.mrb[0].mxu0
        %v417 = vadd.f32 0.0, %v416
        %v418 = vpop.f32.mrb[0].mxu0
        %419 = vmatprep.mubr.bf16.mxu0 0
        %420 = vmatmul.mubr.bf16.gmra.mrb[0].mxu0 %v301
        %v421 = vpop.f32.mrb[0].mxu0
        %v422 = vadd.f32 0.0, %v421
        %v423 = vpop.f32.mrb[0].mxu0
        %v424 = vpop.f32.mrb[0].mxu0
        %v425 = vadd.f32 0.0, %v424
        %v426 = vpop.f32.mrb[0].mxu0
        %427 = vmatprep.mubr.bf16.mxu0 0
        %428 = vmatmul.mubr.bf16.gmra.mrb[0].mxu0 %v302
        %v429 = vpop.f32.mrb[0].mxu0
        %v430 = vadd.f32 0.0, %v429
        %v431 = vpop.f32.mrb[0].mxu0
        %v432 = vpop.f32.mrb[0].mxu0
        %v433 = vadd.f32 0.0, %v432
        %v434 = vpop.f32.mrb[0].mxu0
        %435 = vmatprep.mubr.bf16.mxu0 0
        %436 = vmatmul.mubr.bf16.gmra.mrb[0].mxu0 %v303
        %v437 = vpop.f32.mrb[0].mxu0
        %v438 = vadd.f32 0.0, %v437
        %v439 = vpop.f32.mrb[0].mxu0
        %v440 = vpop.f32.mrb[0].mxu0
        %v441 = vadd.f32 0.0, %v440
        %v442 = vpop.f32.mrb[0].mxu0
        %443 = vmatprep.mubr.bf16.mxu0 0
        %444 = vmatmul.mubr.bf16.gmra.mrb[0].mxu0 %v304
        %v445 = vpop.f32.mrb[0].mxu0
        %v446 = vadd.f32 0.0, %v445
        %v447 = vpop.f32.mrb[0].mxu0
        %v448 = vpop.f32.mrb[0].mxu0
        %v449 = vadd.f32 0.0, %v448
        %v450 = vpop.f32.mrb[0].mxu0
        %451 = vmatprep.mubr.bf16.mxu0 0
        %452 = vmatmul.mubr.bf16.gmra.mrb[0].mxu0 %v305
        %v453 = vpop.f32.mrb[0].mxu0
        %v454 = vadd.f32 0.0, %v453
        %v455 = vpop.f32.mrb[0].mxu0
        %v456 = vpop.f32.mrb[0].mxu0
        %v457 = vadd.f32 0.0, %v456
        %v458 = vpop.f32.mrb[0].mxu0
        %459 = vmatprep.mubr.bf16.mxu0 0
        %460 = vmatmul.mubr.bf16.gmra.mrb[0].mxu0 %v306
        %v461 = vpop.f32.mrb[0].mxu0
        %v462 = vadd.f32 0.0, %v461
        %v463 = vpop.f32.mrb[0].mxu0
        %v464 = vpop.f32.mrb[0].mxu0
        %v465 = vadd.f32 0.0, %v464
        %v466 = vpop.f32.mrb[0].mxu0
        %467 = vdwg.mxu0
        %v468 = vmul.f32 %v406, 2.0
        %v469 = vmul.f32 %v409, 2.0
        %v470 = vmul.f32 %v414, 2.0
        %v471 = vmul.f32 %v417, 2.0
        %v472 = vmul.f32 %v422, 2.0
        %v473 = vmul.f32 %v425, 2.0
        %v474 = vmul.f32 %v430, 2.0
        %v475 = vmul.f32 %v433, 2.0
        %v476 = vmul.f32 %v438, 2.0
        %v477 = vmul.f32 %v441, 2.0
        %v478 = vmul.f32 %v446, 2.0
        %v479 = vmul.f32 %v449, 2.0
        %v480 = vmul.f32 %v454, 2.0
        %v481 = vmul.f32 %v457, 2.0
        %v482 = vmul.f32 %v462, 2.0
        %v483 = vmul.f32 %v465, 2.0
        %v484 = vsub.f32 %v468, %v268
        %v485 = vsub.f32 %v469, %v270
        %v486 = vsub.f32 %v470, %v272
        %v487 = vsub.f32 %v471, %v274
        %v488 = vsub.f32 %v472, %v276
        %v489 = vsub.f32 %v473, %v278
        %v490 = vsub.f32 %v474, %v280
        %v491 = vsub.f32 %v475, %v282
        %v492 = vsub.f32 %v476, %v284
        %v493 = vsub.f32 %v477, %v286
        %v494 = vsub.f32 %v478, %v288
        %v495 = vsub.f32 %v479, %v290
        %v496 = vsub.f32 %v480, %v292
        %v497 = vsub.f32 %v481, %v294
        %v498 = vsub.f32 %v482, %v296
        %v499 = vsub.f32 %v483, %v298
        %v500 = vld [vmem:[%s232] sm:$0x1]
        %v502 = vlaneseq
        %v503 = vshrl.u32 %v502, 7
        %v504 = vsub.s32 0, %v503
        %v505 = vrot.slane %v500, %v504
        %v507 = vsub.f32 %v484, %v505
        %v508 = vsub.f32 %v485, %v505
        %v509 = vsub.f32 %v486, %v505
        %v510 = vsub.f32 %v487, %v505
        %v511 = vsub.f32 %v488, %v505
        %v512 = vsub.f32 %v489, %v505
        %v513 = vsub.f32 %v490, %v505
        %v514 = vsub.f32 %v491, %v505
        %v515 = vsub.f32 %v492, %v505
        %v516 = vsub.f32 %v493, %v505
        %v517 = vsub.f32 %v494, %v505
        %v518 = vsub.f32 %v495, %v505
        %v519 = vsub.f32 %v496, %v505
        %v520 = vsub.f32 %v497, %v505
        %v521 = vsub.f32 %v498, %v505
        %v522 = vsub.f32 %v499, %v505
        %v523 = vmin.f32 %v507, 0.0
        %v524 = vmin.f32 %v508, 0.0
        %v525 = vmin.f32 %v509, 0.0
        %v526 = vmin.f32 %v510, 0.0
        %v527 = vmin.f32 %v511, 0.0
        %v528 = vmin.f32 %v512, 0.0
        %v529 = vmin.f32 %v513, 0.0
        %v530 = vmin.f32 %v514, 0.0
        %v531 = vmin.f32 %v515, 0.0
        %v532 = vmin.f32 %v516, 0.0
        %v533 = vmin.f32 %v517, 0.0
        %v534 = vmin.f32 %v518, 0.0
        %v535 = vmin.f32 %v519, 0.0
        %v536 = vmin.f32 %v520, 0.0
        %v537 = vmin.f32 %v521, 0.0
        %v538 = vmin.f32 %v522, 0.0
        %v539 = vlaneseq
        %v540 = vand.u32 %v539, 127
        %vm541 = vcmp.lt.s32.totalorder %v540, 16
        %v542 = vmul.f32 %v523, 1.442695
        %v543 = vpow.pop %v542
        %v544 = vmul.f32 %v524, 1.442695
        %v545 = vpow.pop %v544
        %v546 = vmul.f32 %v525, 1.442695
        %v547 = vpow.pop %v546
        %v548 = vmul.f32 %v526, 1.442695
        %v549 = vpow.pop %v548
        %v550 = vmul.f32 %v527, 1.442695
        %v551 = vpow.pop %v550
        %v552 = vmul.f32 %v528, 1.442695
        %v553 = vpow.pop %v552
        %v554 = vmul.f32 %v529, 1.442695
        %v555 = vpow.pop %v554
        %v556 = vmul.f32 %v530, 1.442695
        %v557 = vpow.pop %v556
        %v558 = vmul.f32 %v531, 1.442695
        %v559 = vpow.pop %v558
        %v560 = vmul.f32 %v532, 1.442695
        %v561 = vpow.pop %v560
        %v562 = vmul.f32 %v533, 1.442695
        %v563 = vpow.pop %v562
        %v564 = vmul.f32 %v534, 1.442695
        %v565 = vpow.pop %v564
        %v566 = vmul.f32 %v535, 1.442695
        %v567 = vpow.pop %v566
        %v568 = vmul.f32 %v536, 1.442695
        %v569 = vpow.pop %v568
        %v570 = vmul.f32 %v537, 1.442695
        %v571 = vpow.pop %v570
        %v572 = vmul.f32 %v538, 1.442695
        %v573 = vpow.pop %v572
        %v574 = vsel %vm541, %v543, 0.0
        %v575 = vsel %vm541, %v545, 0.0
        %v576 = vsel %vm541, %v547, 0.0
        %v577 = vsel %vm541, %v549, 0.0
        %v578 = vsel %vm541, %v551, 0.0
        %v579 = vsel %vm541, %v553, 0.0
        %v580 = vsel %vm541, %v555, 0.0
        %v581 = vsel %vm541, %v557, 0.0
        %v582 = vsel %vm541, %v559, 0.0
        %v583 = vsel %vm541, %v561, 0.0
        %v584 = vsel %vm541, %v563, 0.0
        %v585 = vsel %vm541, %v565, 0.0
        %v586 = vsel %vm541, %v567, 0.0
        %v587 = vsel %vm541, %v569, 0.0
        %v588 = vsel %vm541, %v571, 0.0
        %v589 = vsel %vm541, %v573, 0.0
        %590 = vadd.xlane.f32.xlu0 %v574
        %v591 = vpop.xlane.xlu0 %590
        %592 = vadd.xlane.f32.xlu0 %v575
        %v593 = vpop.xlane.xlu0 %592
        %594 = vadd.xlane.f32.xlu0 %v576
        %v595 = vpop.xlane.xlu0 %594
        %596 = vadd.xlane.f32.xlu0 %v577
        %v597 = vpop.xlane.xlu0 %596
        %598 = vadd.xlane.f32.xlu0 %v578
        %v599 = vpop.xlane.xlu0 %598
        %600 = vadd.xlane.f32.xlu0 %v579
        %v601 = vpop.xlane.xlu0 %600
        %602 = vadd.xlane.f32.xlu0 %v580
        %v603 = vpop.xlane.xlu0 %602
        %604 = vadd.xlane.f32.xlu0 %v581
        %v605 = vpop.xlane.xlu0 %604
        %606 = vadd.xlane.f32.xlu0 %v582
        %v607 = vpop.xlane.xlu0 %606
        %608 = vadd.xlane.f32.xlu0 %v583
        %v609 = vpop.xlane.xlu0 %608
        %610 = vadd.xlane.f32.xlu0 %v584
        %v611 = vpop.xlane.xlu0 %610
        %612 = vadd.xlane.f32.xlu0 %v585
        %v613 = vpop.xlane.xlu0 %612
        %614 = vadd.xlane.f32.xlu0 %v586
        %v615 = vpop.xlane.xlu0 %614
        %616 = vadd.xlane.f32.xlu0 %v587
        %v617 = vpop.xlane.xlu0 %616
        %618 = vadd.xlane.f32.xlu0 %v588
        %v619 = vpop.xlane.xlu0 %618
        %620 = vadd.xlane.f32.xlu0 %v589
        %v621 = vpop.xlane.xlu0 %620
        %v622 = vmax.f32 %v591, 1e-30
        %v623 = vmax.f32 %v593, 1e-30
        %v624 = vmax.f32 %v595, 1e-30
        %v625 = vmax.f32 %v597, 1e-30
        %v626 = vmax.f32 %v599, 1e-30
        %v627 = vmax.f32 %v601, 1e-30
        %v628 = vmax.f32 %v603, 1e-30
        %v629 = vmax.f32 %v605, 1e-30
        %v630 = vmax.f32 %v607, 1e-30
        %v631 = vmax.f32 %v609, 1e-30
        %v632 = vmax.f32 %v611, 1e-30
        %v633 = vmax.f32 %v613, 1e-30
        %v634 = vmax.f32 %v615, 1e-30
        %v635 = vmax.f32 %v617, 1e-30
        %v636 = vmax.f32 %v619, 1e-30
        %v637 = vmax.f32 %v621, 1e-30
        %v638 = vrcp.pop %v622
        %v639 = vmul.f32 1.0, %v638
        %v640 = vrcp.pop %v623
        %v641 = vmul.f32 1.0, %v640
        %v642 = vrcp.pop %v624
        %v643 = vmul.f32 1.0, %v642
        %v644 = vrcp.pop %v625
        %v645 = vmul.f32 1.0, %v644
        %v646 = vrcp.pop %v626
        %v647 = vmul.f32 1.0, %v646
        %v648 = vrcp.pop %v627
        %v649 = vmul.f32 1.0, %v648
        %v650 = vrcp.pop %v628
        %v651 = vmul.f32 1.0, %v650
        %v652 = vrcp.pop %v629
        %v653 = vmul.f32 1.0, %v652
        %v654 = vrcp.pop %v630
        %v655 = vmul.f32 1.0, %v654
        %v656 = vrcp.pop %v631
        %v657 = vmul.f32 1.0, %v656
        %v658 = vrcp.pop %v632
        %v659 = vmul.f32 1.0, %v658
        %v660 = vrcp.pop %v633
        %v661 = vmul.f32 1.0, %v660
        %v662 = vrcp.pop %v634
        %v663 = vmul.f32 1.0, %v662
        %v664 = vrcp.pop %v635
        %v665 = vmul.f32 1.0, %v664
        %v666 = vrcp.pop %v636
        %v667 = vmul.f32 1.0, %v666
        %v668 = vrcp.pop %v637
        %v669 = vmul.f32 1.0, %v668
        %v670 = vmul.f32 %v574, %v639
        %v671 = vmul.f32 %v575, %v641
        %v672 = vmul.f32 %v576, %v643
        %v673 = vmul.f32 %v577, %v645
        %v674 = vmul.f32 %v578, %v647
        %v675 = vmul.f32 %v579, %v649
        %v676 = vmul.f32 %v580, %v651
        %v677 = vmul.f32 %v581, %v653
        %v678 = vmul.f32 %v582, %v655
        %v679 = vmul.f32 %v583, %v657
        %v680 = vmul.f32 %v584, %v659
        %v681 = vmul.f32 %v585, %v661
        %v682 = vmul.f32 %v586, %v663
        %v683 = vmul.f32 %v587, %v665
        %v684 = vmul.f32 %v588, %v667
        %v685 = vmul.f32 %v589, %v669
        %v686 = vadd.f32 %v670, 1e-10
        %v687 = vadd.f32 %v671, 1e-10
        %v688 = vadd.f32 %v672, 1e-10
        %v689 = vadd.f32 %v673, 1e-10
        %v690 = vadd.f32 %v674, 1e-10
        %v691 = vadd.f32 %v675, 1e-10
        %v692 = vadd.f32 %v676, 1e-10
        %v693 = vadd.f32 %v677, 1e-10
        %v694 = vadd.f32 %v678, 1e-10
        %v695 = vadd.f32 %v679, 1e-10
        %v696 = vadd.f32 %v680, 1e-10
        %v697 = vadd.f32 %v681, 1e-10
        %v698 = vadd.f32 %v682, 1e-10
        %v699 = vadd.f32 %v683, 1e-10
        %v700 = vadd.f32 %v684, 1e-10
        %v701 = vadd.f32 %v685, 1e-10
        %702 = vst [vmem:[%s214] sm:$0xff] %v686
        %703 = vst [vmem:[%s214 + $0x8] sm:$0xff] %v687
        %704 = vst [vmem:[%s214 + $0x10] sm:$0xff] %v688
        %705 = vst [vmem:[%s214 + $0x18] sm:$0xff] %v689
        %706 = vst [vmem:[%s214 + $0x20] sm:$0xff] %v690
        %707 = vst [vmem:[%s214 + $0x28] sm:$0xff] %v691
        %708 = vst [vmem:[%s214 + $0x30] sm:$0xff] %v692
        %709 = vst [vmem:[%s214 + $0x38] sm:$0xff] %v693
        %710 = vst [vmem:[%s214 + $0x40] sm:$0xff] %v694
        %711 = vst [vmem:[%s214 + $0x48] sm:$0xff] %v695
        %712 = vst [vmem:[%s214 + $0x50] sm:$0xff] %v696
        %713 = vst [vmem:[%s214 + $0x58] sm:$0xff] %v697
        %714 = vst [vmem:[%s214 + $0x60] sm:$0xff] %v698
        %715 = vst [vmem:[%s214 + $0x68] sm:$0xff] %v699
        %716 = vst [vmem:[%s214 + $0x70] sm:$0xff] %v700
        %717 = vst [vmem:[%s214 + $0x78] sm:$0xff] %v701
        %s718 = sand.u32 %s119, 1
        %s719 = scalar_lea.sflag [#allocation3], %s718
        %s720 = sand.u32 %s119, 1
        %s721 = smul.addr %s720, 128
        %s722 = scalar_lea.vmem [#allocation2], %s721
        // Predicated region
        $region33: #{_adagae_forward_stacked.9} parent=31 // pred_check
          %p723 = pneg %p129
        $region34: #{_adagae_forward_stacked.9} parent=31 // pred_check_branch
          %725 = sbr.rel (%p723) target = $region36
        $region35: #{_adagae_forward_stacked.9} parent=31 // pred_region
          %s726 = smul.u32 16, %s22
          %s728 = ssub.s32 2048, 2048
          %729 = vsyncadd %s719, %s728
          %s730 = smul.addr %s21, 16
          %s731 = sadd.s32 %s726, %s730
          %s732 = smul.addr %s731, 128
          %s733 = scalar_lea.hbm %s3, %s732
          %s734 = sshll.u32 %s722, 4
          %s735 = int_to_ptr.vmem [resolvable:$true] %s734
          %740 = dma.vmem_to_hbm [thread:$0]  %s735, 2048, %s733, %s719, 128, 128, 8
        $region36: #{_adagae_forward_stacked.9} parent=31 // pred_fallthru
          _
      $region32: #{_adagae_forward_stacked.9} parent=5 // pred_fallthru
        _
      %p741 = scmp.le.s32.totalorder 2, %s12
      // Predicated region
      $region37: #{_adagae_forward_stacked.9} parent=5 // pred_check
        %p742 = pneg %p741
      $region38: #{_adagae_forward_stacked.9} parent=5 // pred_check_branch
        %744 = sbr.rel (%p742) target = $region40
      $region39: #{_adagae_forward_stacked.9} parent=5 // pred_region
        %s745 = ssub.s32 %s12, 2
        // Predicated region
        $region41: #{_adagae_forward_stacked.9} parent=39 // pred_check
          %p746 = pneg %p135
        $region42: #{_adagae_forward_stacked.9} parent=39 // pred_check_branch
          %748 = sbr.rel (%p746) target = $region44
        $region43: #{_adagae_forward_stacked.9} parent=39 // pred_region
          %s749 = sand.u32 %s120, 1
          %s750 = scalar_lea.sflag [#allocation3], %s749
          %s751 = sand.u32 %s120, 1
          %s752 = smul.addr %s751, 128
          %s753 = scalar_lea.vmem [#allocation2], %s752
          %754 = dma.done %s750, 2048
        $region44: #{_adagae_forward_stacked.9} parent=39 // pred_fallthru
          _
      $region40: #{_adagae_forward_stacked.9} parent=5 // pred_fallthru
        _
    $region6: #{_adagae_forward_stacked.9} parent=1 // loop_footer
      %s16 = sadd.s32 1, %s12
    $region7: #{_adagae_forward_stacked.9} parent=1 // loop_footer_branch
      %11 = sbr.rel target = $region3
    $region8: #{_adagae_forward_stacked.9} parent=1 // loop_exit
      _
    %755 = vsyncpa [#allocation3], 1
    %s756 = scalar_lea.sflag [#allocation3], 1
    %757 = vsyncpa %s756, 1

</llo_original>
